<compile_context>
chip_gen: v6e
topology: v6e:2x2x1
jax: 0.10.0
libtpu: 0.0.40
codegen_flags: <defaults>
</compile_context>

<pallas_src>
import functools

import jax
import jax.numpy as jnp
from jax.experimental import pallas as pl
from jax.experimental.pallas import tpu as pltpu

_HIGHEST = jax.lax.Precision.HIGHEST

# Batch rounding: multiple of 256 keeps every MXU result tile and every output
# vreg fully lane-dense on v5e (128-wide MXU) and v6e/v7x (256-wide MXU).
_LANE_TILE = 256


def _round_up(n, m):
    return ((n + m - 1) // m) * m


def mlp_kernel(x_ref, w1_ref, b1_ref, w2_ref, b2_ref, w3_ref, b3_ref, o_ref):
    # x block: (TB, 22).  Activations are kept as (features, TB) so the batch
    # sits on the lane/N dimension of every matmul.
    x = x_ref[...]

    # encoder: Linear(22,10) -> ReLU -> Linear(10,5)
    # (10,22) contracted with (TB,22) on their last dims -> (10, TB).
    h1 = jax.lax.dot_general(
        w1_ref[...], x, (((1,), (1,)), ((), ())),
        preferred_element_type=jnp.float32, precision=_HIGHEST) + b1_ref[...]
    h1 = jnp.maximum(h1, 0.0)

    h2 = jax.lax.dot_general(
        w2_ref[...], h1, (((1,), (0,)), ((), ())),
        preferred_element_type=jnp.float32, precision=_HIGHEST) + b2_ref[...]

    # cloud: ReLU -> Linear(5,2)
    h2 = jnp.maximum(h2, 0.0)
    out = jax.lax.dot_general(
        w3_ref[...], h2, (((1,), (0,)), ((), ())),
        preferred_element_type=jnp.float32, precision=_HIGHEST) + b3_ref[...]

    o_ref[...] = out.astype(o_ref.dtype)   # (2, TB): lane-dense store


def mlp_forward(x, params, *, block_b=4096):
    """x: (B, 22) f32 -> (B, 2) f32."""
    w1, b1, w2, b2, w3, b3 = params
    B = x.shape[0]

    # Batch tile: multiple of _LANE_TILE, big enough to amortize the ~0.35 us
    # per-grid-step overhead, capped at block_b rows.
    full = _round_up(B, _LANE_TILE)
    tb = min(block_b, full)
    # v7x has two TensorCores: keep at least two "parallel" grid steps when
    # the batch is large enough to split into lane-dense halves.
    if full // tb < 2 and full >= 2 * _LANE_TILE:
        tb = _round_up(full // 2, _LANE_TILE)
    padded_b = _round_up(B, tb)
    if padded_b != B:
        x = jnp.pad(x, ((0, padded_b - B), (0, 0)))

    grid = (padded_b // tb,)

    # Weights / biases: full-array blocks with constant index maps -> resident.
    const = lambda a: pl.BlockSpec(a.shape, lambda i: (0,) * a.ndim)

    flops = 2 * (22 * 10 + 10 * 5 + 5 * 2) * padded_b
    bytes_accessed = 4 * ((22 + 2) * padded_b
                          + 22 * 10 + 10 + 10 * 5 + 5 + 5 * 2 + 2)

    out_t = pl.pallas_call(
        mlp_kernel,
        out_shape=jax.ShapeDtypeStruct((2, padded_b), jnp.float32),
        grid=grid,
        in_specs=[
            pl.BlockSpec((tb, 22), lambda i: (i, 0)),   # x: batch-tiled rows
            const(w1), const(b1),
            const(w2), const(b2),
            const(w3), const(b3),
        ],
        out_specs=pl.BlockSpec((2, tb), lambda i: (0, i)),  # batch on lanes
        compiler_params=pltpu.CompilerParams(
            dimension_semantics=("parallel",),
        ),
        cost_estimate=pl.CostEstimate(
            flops=flops, transcendentals=0, bytes_accessed=bytes_accessed),
    )(x, w1, b1, w2, b2, w3, b3)

    out_t = out_t[:, :B] if padded_b != B else out_t
    return out_t.T   # only the tiny (2, B) result is transposed back


def init_params(key):
    """Deterministic init mimicking nn.Linear's U(-1/sqrt(fan_in), +1/sqrt(fan_in)).

    Weights use PyTorch layout (out_features, in_features); biases are stored
    as (out_features, 1) columns so they broadcast over the lane/batch dim
    inside the kernel.
    """
    dims = [(22, 10), (10, 5), (5, 2)]
    params = []
    for i, (fan_in, fan_out) in enumerate(dims):
        kw, kb = jax.random.split(jax.random.fold_in(key, i))
        bound = 1.0 / jnp.sqrt(float(fan_in))
        w = jax.random.uniform(kw, (fan_out, fan_in), jnp.float32, -bound, bound)
        b = jax.random.uniform(kb, (fan_out, 1), jnp.float32, -bound, bound)
        params += [w, b]
    return tuple(params)


def reference_forward(x, params):
    w1, b1, w2, b2, w3, b3 = params
    dot = functools.partial(jnp.dot, precision=_HIGHEST)
    h = jnp.maximum(dot(x, w1.T) + b1.T, 0.0)
    h = dot(h, w2.T) + b2.T
    h = jnp.maximum(h, 0.0)
    return dot(h, w3.T) + b3.T


if __name__ == "__main__":
    key = jax.random.PRNGKey(0)
    k_x, k_p = jax.random.split(key)
    params = init_params(k_p)

    # Small shapes consistent with the module (feature dim 22).
    # B=13 exercises tail padding; B=300 exercises the multi-tile (grid>=2) path.
    for B in (8, 13, 300):
        x = jax.random.normal(jax.random.fold_in(k_x, B), (B, 22), dtype=jnp.float32)
        out = jax.block_until_ready(mlp_forward(x, params))
        ref = reference_forward(x, params)
        assert out.shape == (B, 2), out.shape
        assert jnp.allclose(out, ref, atol=1e-5, rtol=1e-5), f"mismatch vs reference (B={B})"

    print("KERNEL_OK")
</pallas_src>

<mosaic_0001>
module attributes {stable_mosaic.version = 11 : i64} {
  func.func @mlp_kernel(%arg0: i32, %arg1: memref<256x22xf32, #tpu.memory_space<vmem>>, %arg2: memref<10x22xf32, #tpu.memory_space<vmem>>, %arg3: memref<10x1xf32, #tpu.memory_space<vmem>>, %arg4: memref<5x10xf32, #tpu.memory_space<vmem>>, %arg5: memref<5x1xf32, #tpu.memory_space<vmem>>, %arg6: memref<2x5xf32, #tpu.memory_space<vmem>>, %arg7: memref<2x1xf32, #tpu.memory_space<vmem>>, %arg8: memref<2x256xf32, #tpu.memory_space<vmem>>) attributes {dimension_semantics = [#tpu.dimension_semantics<parallel>], iteration_bounds = array<i64: 1>, scalar_prefetch = 0 : i64, scratch_operands = 0 : i64, tpu.core_type = #tpu.core_type<tc>, window_params = [{transform_indices = @transform_0, window_bounds = array<i64: 256, 22>}, {pipeline_mode = #tpu.pipeline_mode<synchronous>, transform_indices = @transform_1, window_bounds = array<i64: 10, 22>}, {pipeline_mode = #tpu.pipeline_mode<synchronous>, transform_indices = @transform_2, window_bounds = array<i64: 10, 1>}, {pipeline_mode = #tpu.pipeline_mode<synchronous>, transform_indices = @transform_3, window_bounds = array<i64: 5, 10>}, {pipeline_mode = #tpu.pipeline_mode<synchronous>, transform_indices = @transform_4, window_bounds = array<i64: 5, 1>}, {pipeline_mode = #tpu.pipeline_mode<synchronous>, transform_indices = @transform_5, window_bounds = array<i64: 2, 5>}, {pipeline_mode = #tpu.pipeline_mode<synchronous>, transform_indices = @transform_6, window_bounds = array<i64: 2, 1>}, {transform_indices = @transform_7, window_bounds = array<i64: 2, 256>}]} {
    %c0 = arith.constant 0 : index
    %c0_0 = arith.constant 0 : index
    %0 = vector.load %arg1[%c0, %c0_0] : memref<256x22xf32, #tpu.memory_space<vmem>>, vector<256x22xf32>
    %c0_1 = arith.constant 0 : index
    %c0_2 = arith.constant 0 : index
    %1 = vector.load %arg2[%c0_1, %c0_2] : memref<10x22xf32, #tpu.memory_space<vmem>>, vector<10x22xf32>
    %cst = arith.constant dense<0.000000e+00> : vector<10x256xf32>
    %2 = tpu.matmul %1, %0, %cst {dimension_numbers = #tpu.dot_dimension_numbers<[1], [1], [0], [0], [0, 0, 1, 0], [], []>, precision = #tpu.contract_precision<fp32>} : vector<10x22xf32>, vector<256x22xf32>, vector<10x256xf32> -> vector<10x256xf32>
    %c0_3 = arith.constant 0 : index
    %c0_4 = arith.constant 0 : index
    %3 = vector.load %arg3[%c0_3, %c0_4] : memref<10x1xf32, #tpu.memory_space<vmem>>, vector<10x1xf32>
    %4 = vector.broadcast %3 : vector<10x1xf32> to vector<10x256xf32>
    %5 = arith.addf %2, %4 : vector<10x256xf32>
    %cst_5 = arith.constant 0.000000e+00 : f32
    %6 = vector.broadcast %cst_5 : f32 to vector<10x256xf32>
    %7 = arith.maximumf %5, %6 : vector<10x256xf32>
    %c0_6 = arith.constant 0 : index
    %c0_7 = arith.constant 0 : index
    %8 = vector.load %arg4[%c0_6, %c0_7] : memref<5x10xf32, #tpu.memory_space<vmem>>, vector<5x10xf32>
    %cst_8 = arith.constant dense<0.000000e+00> : vector<5x256xf32>
    %9 = tpu.matmul %8, %7, %cst_8 {dimension_numbers = #tpu.dot_dimension_numbers<[1], [0], [0], [1], [0, 0, 1, 1], [], []>, precision = #tpu.contract_precision<fp32>} : vector<5x10xf32>, vector<10x256xf32>, vector<5x256xf32> -> vector<5x256xf32>
    %c0_9 = arith.constant 0 : index
    %c0_10 = arith.constant 0 : index
    %10 = vector.load %arg5[%c0_9, %c0_10] : memref<5x1xf32, #tpu.memory_space<vmem>>, vector<5x1xf32>
    %11 = vector.broadcast %10 : vector<5x1xf32> to vector<5x256xf32>
    %12 = arith.addf %9, %11 : vector<5x256xf32>
    %cst_11 = arith.constant 0.000000e+00 : f32
    %13 = vector.broadcast %cst_11 : f32 to vector<5x256xf32>
    %14 = arith.maximumf %12, %13 : vector<5x256xf32>
    %c0_12 = arith.constant 0 : index
    %c0_13 = arith.constant 0 : index
    %15 = vector.load %arg6[%c0_12, %c0_13] : memref<2x5xf32, #tpu.memory_space<vmem>>, vector<2x5xf32>
    %cst_14 = arith.constant dense<0.000000e+00> : vector<2x256xf32>
    %16 = tpu.matmul %15, %14, %cst_14 {dimension_numbers = #tpu.dot_dimension_numbers<[1], [0], [0], [1], [0, 0, 1, 1], [], []>, precision = #tpu.contract_precision<fp32>} : vector<2x5xf32>, vector<5x256xf32>, vector<2x256xf32> -> vector<2x256xf32>
    %c0_15 = arith.constant 0 : index
    %c0_16 = arith.constant 0 : index
    %17 = vector.load %arg7[%c0_15, %c0_16] : memref<2x1xf32, #tpu.memory_space<vmem>>, vector<2x1xf32>
    %18 = vector.broadcast %17 : vector<2x1xf32> to vector<2x256xf32>
    %19 = arith.addf %16, %18 : vector<2x256xf32>
    %c0_17 = arith.constant 0 : index
    %c0_18 = arith.constant 0 : index
    %20 = vector.load %arg8[%c0_17, %c0_18] : memref<2x256xf32, #tpu.memory_space<vmem>>, vector<2x256xf32>
    tpu.vector_store %arg8[%c0_17, %c0_18], %19 {strides = array<i32>} : memref<2x256xf32, #tpu.memory_space<vmem>>, vector<2x256xf32>,
    return
  }
  func.func @transform_0(%arg0: i32) -> (i32, i32) {
    %c0_i32 = arith.constant 0 : i32
    %c0_i32_0 = arith.constant 0 : i32
    return %arg0, %c0_i32 : i32, i32
  }
  func.func @transform_1(%arg0: i32) -> (i32, i32) {
    %c0_i32 = arith.constant 0 : i32
    %c0_i32_0 = arith.constant 0 : i32
    %c0_i32_1 = arith.constant 0 : i32
    return %c0_i32, %c0_i32_0 : i32, i32
  }
  func.func @transform_2(%arg0: i32) -> (i32, i32) {
    %c0_i32 = arith.constant 0 : i32
    %c0_i32_0 = arith.constant 0 : i32
    %c0_i32_1 = arith.constant 0 : i32
    return %c0_i32, %c0_i32_0 : i32, i32
  }
  func.func @transform_3(%arg0: i32) -> (i32, i32) {
    %c0_i32 = arith.constant 0 : i32
    %c0_i32_0 = arith.constant 0 : i32
    %c0_i32_1 = arith.constant 0 : i32
    return %c0_i32, %c0_i32_0 : i32, i32
  }
  func.func @transform_4(%arg0: i32) -> (i32, i32) {
    %c0_i32 = arith.constant 0 : i32
    %c0_i32_0 = arith.constant 0 : i32
    %c0_i32_1 = arith.constant 0 : i32
    return %c0_i32, %c0_i32_0 : i32, i32
  }
  func.func @transform_5(%arg0: i32) -> (i32, i32) {
    %c0_i32 = arith.constant 0 : i32
    %c0_i32_0 = arith.constant 0 : i32
    %c0_i32_1 = arith.constant 0 : i32
    return %c0_i32, %c0_i32_0 : i32, i32
  }
  func.func @transform_6(%arg0: i32) -> (i32, i32) {
    %c0_i32 = arith.constant 0 : i32
    %c0_i32_0 = arith.constant 0 : i32
    %c0_i32_1 = arith.constant 0 : i32
    return %c0_i32, %c0_i32_0 : i32, i32
  }
  func.func @transform_7(%arg0: i32) -> (i32, i32) {
    %c0_i32 = arith.constant 0 : i32
    %c0_i32_0 = arith.constant 0 : i32
    return %c0_i32, %arg0 : i32, i32
  }
}

</mosaic_0001>

<llo_original>
// kernel: tpu_custom_call.1
$region0: #{tpu_custom_call.1}
  #allocation0 [shape = 'u32[]', space=smem, size = 0x4, offset = 0x4, fixed_abs, tag = 'smem constant byte address 0x4 - core index']
  #allocation1 [shape = 'u32[144,128]{1,0:T(1,128)}', space=vmem, size = 0x12000, scoped, tag = 'internal scratch']
  %s0 = inlined_call_operand.vmem [shape: f32[256,22], index: 0, kind: input, shape index: {}]
  %s1 = inlined_call_operand.vmem [shape: f32[10,22], index: 1, kind: input, shape index: {}]
  %s2 = inlined_call_operand.vmem [shape: f32[10,1], index: 2, kind: input, shape index: {}]
  %s3 = inlined_call_operand.vmem [shape: f32[5,10], index: 3, kind: input, shape index: {}]
  %s4 = inlined_call_operand.vmem [shape: f32[5,1], index: 4, kind: input, shape index: {}]
  %s5 = inlined_call_operand.vmem [shape: f32[2,5], index: 5, kind: input, shape index: {}]
  %s6 = inlined_call_operand.vmem [shape: f32[2,1], index: 6, kind: input, shape index: {}]
  %s7 = inlined_call_operand.hbm [shape: f32[2,256], index: 7, kind: output, shape index: {}]
  %s8 = sld [smem:[#allocation0]]
  $region38: #{tpu_custom_call.1} parent=0
    _
  %s10 = ssub.s32 1, %s8
  %s11 = scalar_select 0, %s10, %s8
  $region1: #{tpu_custom_call.1} parent=0
    #allocation2 [shape = 'u8[2048]{0}', space=vmem, size = 0x800, scoped, tag = 'output window, operand 0, single buffered']
    #allocation3 [shape = 's32[1]{0}', space=sflag, size = 0x4, scoped, tag = 'scoped memory for tpu_custom_call.1']
    %12 = vsyncpa [#allocation3], 0
    // Predicated region
    $region2: #{tpu_custom_call.1} parent=1 // pred_check
      _
    $region3: #{tpu_custom_call.1} parent=1 // pred_check_branch
      %14 = sbr.rel (0) target = $region5
    $region4: #{tpu_custom_call.1} parent=1 // pred_region
      _
    $region5: #{tpu_custom_call.1} parent=1 // pred_fallthru
      _
    // Predicated region
    $region6: #{tpu_custom_call.1} parent=1 // pred_check
      _
    $region7: #{tpu_custom_call.1} parent=1 // pred_check_branch
      %16 = sbr.rel (0) target = $region9
    $region8: #{tpu_custom_call.1} parent=1 // pred_region
      _
    $region9: #{tpu_custom_call.1} parent=1 // pred_fallthru
      _
    // Predicated region
    $region10: #{tpu_custom_call.1} parent=1 // pred_check
      _
    $region11: #{tpu_custom_call.1} parent=1 // pred_check_branch
      %18 = sbr.rel (0) target = $region13
    $region12: #{tpu_custom_call.1} parent=1 // pred_region
      _
    $region13: #{tpu_custom_call.1} parent=1 // pred_fallthru
      _
    // Predicated region
    $region14: #{tpu_custom_call.1} parent=1 // pred_check
      _
    $region15: #{tpu_custom_call.1} parent=1 // pred_check_branch
      %20 = sbr.rel (0) target = $region17
    $region16: #{tpu_custom_call.1} parent=1 // pred_region
      _
    $region17: #{tpu_custom_call.1} parent=1 // pred_fallthru
      _
    // Predicated region
    $region18: #{tpu_custom_call.1} parent=1 // pred_check
      _
    $region19: #{tpu_custom_call.1} parent=1 // pred_check_branch
      %22 = sbr.rel (0) target = $region21
    $region20: #{tpu_custom_call.1} parent=1 // pred_region
      _
    $region21: #{tpu_custom_call.1} parent=1 // pred_fallthru
      _
    // Predicated region
    $region22: #{tpu_custom_call.1} parent=1 // pred_check
      _
    $region23: #{tpu_custom_call.1} parent=1 // pred_check_branch
      %24 = sbr.rel (0) target = $region25
    $region24: #{tpu_custom_call.1} parent=1 // pred_region
      _
    $region25: #{tpu_custom_call.1} parent=1 // pred_fallthru
      _
    // Predicated region
    $region26: #{tpu_custom_call.1} parent=1 // pred_check
      _
    $region27: #{tpu_custom_call.1} parent=1 // pred_check_branch
      %26 = sbr.rel (0) target = $region29
    $region28: #{tpu_custom_call.1} parent=1 // pred_region
      _
    $region29: #{tpu_custom_call.1} parent=1 // pred_fallthru
      _
    %v27 = vld [vmem:[%s0] sm:$0xff]
    %v28 = vld [vmem:[%s0 + $0x8] sm:$0xff]
    %v29 = vld [vmem:[%s0 + $0x10] sm:$0xff]
    %v30 = vld [vmem:[%s0 + $0x18] sm:$0xff]
    %v31 = vld [vmem:[%s0 + $0x20] sm:$0xff]
    %v32 = vld [vmem:[%s0 + $0x28] sm:$0xff]
    %v33 = vld [vmem:[%s0 + $0x30] sm:$0xff]
    %v34 = vld [vmem:[%s0 + $0x38] sm:$0xff]
    %v35 = vld [vmem:[%s0 + $0x40] sm:$0xff]
    %v36 = vld [vmem:[%s0 + $0x48] sm:$0xff]
    %v37 = vld [vmem:[%s0 + $0x50] sm:$0xff]
    %v38 = vld [vmem:[%s0 + $0x58] sm:$0xff]
    %v39 = vld [vmem:[%s0 + $0x60] sm:$0xff]
    %v40 = vld [vmem:[%s0 + $0x68] sm:$0xff]
    %v41 = vld [vmem:[%s0 + $0x70] sm:$0xff]
    %v42 = vld [vmem:[%s0 + $0x78] sm:$0xff]
    %v43 = vld [vmem:[%s0 + $0x80] sm:$0xff]
    %v44 = vld [vmem:[%s0 + $0x88] sm:$0xff]
    %v45 = vld [vmem:[%s0 + $0x90] sm:$0xff]
    %v46 = vld [vmem:[%s0 + $0x98] sm:$0xff]
    %v47 = vld [vmem:[%s0 + $0xa0] sm:$0xff]
    %v48 = vld [vmem:[%s0 + $0xa8] sm:$0xff]
    %v49 = vld [vmem:[%s0 + $0xb0] sm:$0xff]
    %v50 = vld [vmem:[%s0 + $0xb8] sm:$0xff]
    %v51 = vld [vmem:[%s0 + $0xc0] sm:$0xff]
    %v52 = vld [vmem:[%s0 + $0xc8] sm:$0xff]
    %v53 = vld [vmem:[%s0 + $0xd0] sm:$0xff]
    %v54 = vld [vmem:[%s0 + $0xd8] sm:$0xff]
    %v55 = vld [vmem:[%s0 + $0xe0] sm:$0xff]
    %v56 = vld [vmem:[%s0 + $0xe8] sm:$0xff]
    %v57 = vld [vmem:[%s0 + $0xf0] sm:$0xff]
    %v58 = vld [vmem:[%s0 + $0xf8] sm:$0xff]
    %v59 = vld [vmem:[%s1] sm:$0xff]
    %v60 = vld [vmem:[%s1 + $0x8] sm:$0x3]
    %v61 = vld [vmem:[%s2] sm:$0xff]
    %v62 = vld [vmem:[%s2 + $0x8] sm:$0x3]
    %64 = vset.pattern.permute.xlu0 0
    %65 = vperm.xlu0 %64, %v61
    %v66 = vpop.permute.xlu0 %65
    %69 = vset.pattern.permute.xlu0 0
    %70 = vperm.xlu0 %69, %v62
    %v71 = vpop.permute.xlu0 %70
    %vm73 = vcmask 179200
    %v75 = vsel %vm73, %v59, 0
    %v78 = vsel %vm73, %v60, 0
    %v81 = vsel %vm73, %v27, 0
    %v84 = vsel %vm73, %v28, 0
    %v87 = vsel %vm73, %v29, 0
    %v90 = vsel %vm73, %v30, 0
    %v93 = vsel %vm73, %v31, 0
    %v96 = vsel %vm73, %v32, 0
    %v99 = vsel %vm73, %v33, 0
    %v102 = vsel %vm73, %v34, 0
    %v105 = vsel %vm73, %v35, 0
    %v108 = vsel %vm73, %v36, 0
    %v111 = vsel %vm73, %v37, 0
    %v114 = vsel %vm73, %v38, 0
    %v117 = vsel %vm73, %v39, 0
    %v120 = vsel %vm73, %v40, 0
    %v123 = vsel %vm73, %v41, 0
    %v126 = vsel %vm73, %v42, 0
    %v129 = vsel %vm73, %v43, 0
    %v132 = vsel %vm73, %v44, 0
    %v135 = vsel %vm73, %v45, 0
    %v138 = vsel %vm73, %v46, 0
    %v141 = vsel %vm73, %v47, 0
    %v144 = vsel %vm73, %v48, 0
    %v147 = vsel %vm73, %v49, 0
    %v150 = vsel %vm73, %v50, 0
    %v153 = vsel %vm73, %v51, 0
    %v156 = vsel %vm73, %v52, 0
    %v159 = vsel %vm73, %v53, 0
    %v162 = vsel %vm73, %v54, 0
    %v165 = vsel %vm73, %v55, 0
    %v168 = vsel %vm73, %v56, 0
    %v171 = vsel %vm73, %v57, 0
    %v174 = vsel %vm73, %v58, 0
    %176 = vmatprep.subr.mxu0 0.0
    %v177 = vand.u32 %v126, 4294901760
    %178 = vmatpush1.xpose.msra.mxu0 %v177
    %179 = vmatprep.subr.mxu0 0.0
    %v180 = vand.u32 %v123, 4294901760
    %181 = vmatpush1.xpose.msra.mxu0 %v180
    %182 = vmatprep.subr.mxu0 0.0
    %v183 = vand.u32 %v120, 4294901760
    %184 = vmatpush1.xpose.msra.mxu0 %v183
    %185 = vmatprep.subr.mxu0 0.0
    %v186 = vand.u32 %v117, 4294901760
    %187 = vmatpush1.xpose.msra.mxu0 %v186
    %188 = vmatprep.subr.mxu0 0.0
    %v189 = vand.u32 %v114, 4294901760
    %190 = vmatpush1.xpose.msra.mxu0 %v189
    %191 = vmatprep.subr.mxu0 0.0
    %v192 = vand.u32 %v111, 4294901760
    %193 = vmatpush1.xpose.msra.mxu0 %v192
    %194 = vmatprep.subr.mxu0 0.0
    %v195 = vand.u32 %v108, 4294901760
    %196 = vmatpush1.xpose.msra.mxu0 %v195
    %197 = vmatprep.subr.mxu0 0.0
    %v198 = vand.u32 %v105, 4294901760
    %199 = vmatpush1.xpose.msra.mxu0 %v198
    %200 = vmatprep.subr.mxu0 0.0
    %v201 = vand.u32 %v102, 4294901760
    %202 = vmatpush1.xpose.msra.mxu0 %v201
    %203 = vmatprep.subr.mxu0 0.0
    %v204 = vand.u32 %v99, 4294901760
    %205 = vmatpush1.xpose.msra.mxu0 %v204
    %206 = vmatprep.subr.mxu0 0.0
    %v207 = vand.u32 %v96, 4294901760
    %208 = vmatpush1.xpose.msra.mxu0 %v207
    %209 = vmatprep.subr.mxu0 0.0
    %v210 = vand.u32 %v93, 4294901760
    %211 = vmatpush1.xpose.msra.mxu0 %v210
    %212 = vmatprep.subr.mxu0 0.0
    %v213 = vand.u32 %v90, 4294901760
    %214 = vmatpush1.xpose.msra.mxu0 %v213
    %215 = vmatprep.subr.mxu0 0.0
    %v216 = vand.u32 %v87, 4294901760
    %217 = vmatpush1.xpose.msra.mxu0 %v216
    %218 = vmatprep.subr.mxu0 0.0
    %v219 = vand.u32 %v84, 4294901760
    %220 = vmatpush1.xpose.msra.mxu0 %v219
    %221 = vmatprep.subr.mxu0 0.0
    %v222 = vand.u32 %v81, 4294901760
    %223 = vmatpush1.xpose.msra.mxu0 %v222
    %224 = vmatprep.subr.mxu0 0.0
    %v225 = vand.u32 %v174, 4294901760
    %226 = vmatpush2.xpose.msra.mxu0 %v225
    %227 = vmatprep.subr.mxu0 0.0
    %v228 = vand.u32 %v171, 4294901760
    %229 = vmatpush2.xpose.msra.mxu0 %v228
    %230 = vmatprep.subr.mxu0 0.0
    %v231 = vand.u32 %v168, 4294901760
    %232 = vmatpush2.xpose.msra.mxu0 %v231
    %233 = vmatprep.subr.mxu0 0.0
    %v234 = vand.u32 %v165, 4294901760
    %235 = vmatpush2.xpose.msra.mxu0 %v234
    %236 = vmatprep.subr.mxu0 0.0
    %v237 = vand.u32 %v162, 4294901760
    %238 = vmatpush2.xpose.msra.mxu0 %v237
    %239 = vmatprep.subr.mxu0 0.0
    %v240 = vand.u32 %v159, 4294901760
    %241 = vmatpush2.xpose.msra.mxu0 %v240
    %242 = vmatprep.subr.mxu0 0.0
    %v243 = vand.u32 %v156, 4294901760
    %244 = vmatpush2.xpose.msra.mxu0 %v243
    %245 = vmatprep.subr.mxu0 0.0
    %v246 = vand.u32 %v153, 4294901760
    %247 = vmatpush2.xpose.msra.mxu0 %v246
    %248 = vmatprep.subr.mxu0 0.0
    %v249 = vand.u32 %v150, 4294901760
    %250 = vmatpush2.xpose.msra.mxu0 %v249
    %251 = vmatprep.subr.mxu0 0.0
    %v252 = vand.u32 %v147, 4294901760
    %253 = vmatpush2.xpose.msra.mxu0 %v252
    %254 = vmatprep.subr.mxu0 0.0
    %v255 = vand.u32 %v144, 4294901760
    %256 = vmatpush2.xpose.msra.mxu0 %v255
    %257 = vmatprep.subr.mxu0 0.0
    %v258 = vand.u32 %v141, 4294901760
    %259 = vmatpush2.xpose.msra.mxu0 %v258
    %260 = vmatprep.subr.mxu0 0.0
    %v261 = vand.u32 %v138, 4294901760
    %262 = vmatpush2.xpose.msra.mxu0 %v261
    %263 = vmatprep.subr.mxu0 0.0
    %v264 = vand.u32 %v135, 4294901760
    %265 = vmatpush2.xpose.msra.mxu0 %v264
    %266 = vmatprep.subr.mxu0 0.0
    %v267 = vand.u32 %v132, 4294901760
    %268 = vmatpush2.xpose.msra.mxu0 %v267
    %269 = vmatprep.subr.mxu0 0.0
    %v270 = vand.u32 %v129, 4294901760
    %271 = vmatpush2.xpose.msra.mxu0 %v270
    %272 = vmatprep.mubr.f32.mxu0 0.0
    %v273 = vand.u32 %v75, 4294901760
    %v274 = vsub.f32 %v75, %v273
    %v275 = vand.u32 %v274, 4294901760
    %v276 = vsub.f32 %v274, %v275
    %v277 = vand.u32 %v276, 4294901760
    %278 = vmatmul.mubr.f32.gmra.mxu0 %v277
    %v279 = vpop.f32.mrf.mxu0
    %v280 = vadd.f32 %v66, %v279
    %v281 = vpop.f32.mrf.mxu0
    %v282 = vadd.f32 %v66, %v281
    %283 = vmatprep.mubr.f32.mxu0 0.0
    %v284 = vand.u32 %v78, 4294901760
    %v285 = vsub.f32 %v78, %v284
    %v286 = vand.u32 %v285, 4294901760
    %v287 = vsub.f32 %v285, %v286
    %v288 = vand.u32 %v287, 4294901760
    %289 = vmatmul.mubr.f32.gmra.mxu0 %v288
    %v290 = vpop.f32.mrf.mxu0
    %v291 = vadd.f32 %v71, %v290
    %v292 = vpop.f32.mrf.mxu0
    %v293 = vadd.f32 %v71, %v292
    %294 = vdwg.mxu0
    %295 = vmatprep.subr.mxu0 0.0
    %v296 = vand.u32 %v126, 4294901760
    %v297 = vsub.f32 %v126, %v296
    %v298 = vand.u32 %v297, 4294901760
    %v299 = vsub.f32 %v297, %v298
    %v300 = vand.u32 %v299, 4294901760
    %301 = vmatpush1.xpose.msra.mxu0 %v300
    %302 = vmatprep.subr.mxu0 0.0
    %v303 = vand.u32 %v123, 4294901760
    %v304 = vsub.f32 %v123, %v303
    %v305 = vand.u32 %v304, 4294901760
    %v306 = vsub.f32 %v304, %v305
    %v307 = vand.u32 %v306, 4294901760
    %308 = vmatpush1.xpose.msra.mxu0 %v307
    %309 = vmatprep.subr.mxu0 0.0
    %v310 = vand.u32 %v120, 4294901760
    %v311 = vsub.f32 %v120, %v310
    %v312 = vand.u32 %v311, 4294901760
    %v313 = vsub.f32 %v311, %v312
    %v314 = vand.u32 %v313, 4294901760
    %315 = vmatpush1.xpose.msra.mxu0 %v314
    %316 = vmatprep.subr.mxu0 0.0
    %v317 = vand.u32 %v117, 4294901760
    %v318 = vsub.f32 %v117, %v317
    %v319 = vand.u32 %v318, 4294901760
    %v320 = vsub.f32 %v318, %v319
    %v321 = vand.u32 %v320, 4294901760
    %322 = vmatpush1.xpose.msra.mxu0 %v321
    %323 = vmatprep.subr.mxu0 0.0
    %v324 = vand.u32 %v114, 4294901760
    %v325 = vsub.f32 %v114, %v324
    %v326 = vand.u32 %v325, 4294901760
    %v327 = vsub.f32 %v325, %v326
    %v328 = vand.u32 %v327, 4294901760
    %329 = vmatpush1.xpose.msra.mxu0 %v328
    %330 = vmatprep.subr.mxu0 0.0
    %v331 = vand.u32 %v111, 4294901760
    %v332 = vsub.f32 %v111, %v331
    %v333 = vand.u32 %v332, 4294901760
    %v334 = vsub.f32 %v332, %v333
    %v335 = vand.u32 %v334, 4294901760
    %336 = vmatpush1.xpose.msra.mxu0 %v335
    %337 = vmatprep.subr.mxu0 0.0
    %v338 = vand.u32 %v108, 4294901760
    %v339 = vsub.f32 %v108, %v338
    %v340 = vand.u32 %v339, 4294901760
    %v341 = vsub.f32 %v339, %v340
    %v342 = vand.u32 %v341, 4294901760
    %343 = vmatpush1.xpose.msra.mxu0 %v342
    %344 = vmatprep.subr.mxu0 0.0
    %v345 = vand.u32 %v105, 4294901760
    %v346 = vsub.f32 %v105, %v345
    %v347 = vand.u32 %v346, 4294901760
    %v348 = vsub.f32 %v346, %v347
    %v349 = vand.u32 %v348, 4294901760
    %350 = vmatpush1.xpose.msra.mxu0 %v349
    %351 = vmatprep.subr.mxu0 0.0
    %v352 = vand.u32 %v102, 4294901760
    %v353 = vsub.f32 %v102, %v352
    %v354 = vand.u32 %v353, 4294901760
    %v355 = vsub.f32 %v353, %v354
    %v356 = vand.u32 %v355, 4294901760
    %357 = vmatpush1.xpose.msra.mxu0 %v356
    %358 = vmatprep.subr.mxu0 0.0
    %v359 = vand.u32 %v99, 4294901760
    %v360 = vsub.f32 %v99, %v359
    %v361 = vand.u32 %v360, 4294901760
    %v362 = vsub.f32 %v360, %v361
    %v363 = vand.u32 %v362, 4294901760
    %364 = vmatpush1.xpose.msra.mxu0 %v363
    %365 = vmatprep.subr.mxu0 0.0
    %v366 = vand.u32 %v96, 4294901760
    %v367 = vsub.f32 %v96, %v366
    %v368 = vand.u32 %v367, 4294901760
    %v369 = vsub.f32 %v367, %v368
    %v370 = vand.u32 %v369, 4294901760
    %371 = vmatpush1.xpose.msra.mxu0 %v370
    %372 = vmatprep.subr.mxu0 0.0
    %v373 = vand.u32 %v93, 4294901760
    %v374 = vsub.f32 %v93, %v373
    %v375 = vand.u32 %v374, 4294901760
    %v376 = vsub.f32 %v374, %v375
    %v377 = vand.u32 %v376, 4294901760
    %378 = vmatpush1.xpose.msra.mxu0 %v377
    %379 = vmatprep.subr.mxu0 0.0
    %v380 = vand.u32 %v90, 4294901760
    %v381 = vsub.f32 %v90, %v380
    %v382 = vand.u32 %v381, 4294901760
    %v383 = vsub.f32 %v381, %v382
    %v384 = vand.u32 %v383, 4294901760
    %385 = vmatpush1.xpose.msra.mxu0 %v384
    %386 = vmatprep.subr.mxu0 0.0
    %v387 = vand.u32 %v87, 4294901760
    %v388 = vsub.f32 %v87, %v387
    %v389 = vand.u32 %v388, 4294901760
    %v390 = vsub.f32 %v388, %v389
    %v391 = vand.u32 %v390, 4294901760
    %392 = vmatpush1.xpose.msra.mxu0 %v391
    %393 = vmatprep.subr.mxu0 0.0
    %v394 = vand.u32 %v84, 4294901760
    %v395 = vsub.f32 %v84, %v394
    %v396 = vand.u32 %v395, 4294901760
    %v397 = vsub.f32 %v395, %v396
    %v398 = vand.u32 %v397, 4294901760
    %399 = vmatpush1.xpose.msra.mxu0 %v398
    %400 = vmatprep.subr.mxu0 0.0
    %v401 = vand.u32 %v81, 4294901760
    %v402 = vsub.f32 %v81, %v401
    %v403 = vand.u32 %v402, 4294901760
    %v404 = vsub.f32 %v402, %v403
    %v405 = vand.u32 %v404, 4294901760
    %406 = vmatpush1.xpose.msra.mxu0 %v405
    %407 = vmatprep.subr.mxu0 0.0
    %v408 = vand.u32 %v174, 4294901760
    %v409 = vsub.f32 %v174, %v408
    %v410 = vand.u32 %v409, 4294901760
    %v411 = vsub.f32 %v409, %v410
    %v412 = vand.u32 %v411, 4294901760
    %413 = vmatpush2.xpose.msra.mxu0 %v412
    %414 = vmatprep.subr.mxu0 0.0
    %v415 = vand.u32 %v171, 4294901760
    %v416 = vsub.f32 %v171, %v415
    %v417 = vand.u32 %v416, 4294901760
    %v418 = vsub.f32 %v416, %v417
    %v419 = vand.u32 %v418, 4294901760
    %420 = vmatpush2.xpose.msra.mxu0 %v419
    %421 = vmatprep.subr.mxu0 0.0
    %v422 = vand.u32 %v168, 4294901760
    %v423 = vsub.f32 %v168, %v422
    %v424 = vand.u32 %v423, 4294901760
    %v425 = vsub.f32 %v423, %v424
    %v426 = vand.u32 %v425, 4294901760
    %427 = vmatpush2.xpose.msra.mxu0 %v426
    %428 = vmatprep.subr.mxu0 0.0
    %v429 = vand.u32 %v165, 4294901760
    %v430 = vsub.f32 %v165, %v429
    %v431 = vand.u32 %v430, 4294901760
    %v432 = vsub.f32 %v430, %v431
    %v433 = vand.u32 %v432, 4294901760
    %434 = vmatpush2.xpose.msra.mxu0 %v433
    %435 = vmatprep.subr.mxu0 0.0
    %v436 = vand.u32 %v162, 4294901760
    %v437 = vsub.f32 %v162, %v436
    %v438 = vand.u32 %v437, 4294901760
    %v439 = vsub.f32 %v437, %v438
    %v440 = vand.u32 %v439, 4294901760
    %441 = vmatpush2.xpose.msra.mxu0 %v440
    %442 = vmatprep.subr.mxu0 0.0
    %v443 = vand.u32 %v159, 4294901760
    %v444 = vsub.f32 %v159, %v443
    %v445 = vand.u32 %v444, 4294901760
    %v446 = vsub.f32 %v444, %v445
    %v447 = vand.u32 %v446, 4294901760
    %448 = vmatpush2.xpose.msra.mxu0 %v447
    %449 = vmatprep.subr.mxu0 0.0
    %v450 = vand.u32 %v156, 4294901760
    %v451 = vsub.f32 %v156, %v450
    %v452 = vand.u32 %v451, 4294901760
    %v453 = vsub.f32 %v451, %v452
    %v454 = vand.u32 %v453, 4294901760
    %455 = vmatpush2.xpose.msra.mxu0 %v454
    %456 = vmatprep.subr.mxu0 0.0
    %v457 = vand.u32 %v153, 4294901760
    %v458 = vsub.f32 %v153, %v457
    %v459 = vand.u32 %v458, 4294901760
    %v460 = vsub.f32 %v458, %v459
    %v461 = vand.u32 %v460, 4294901760
    %462 = vmatpush2.xpose.msra.mxu0 %v461
    %463 = vmatprep.subr.mxu0 0.0
    %v464 = vand.u32 %v150, 4294901760
    %v465 = vsub.f32 %v150, %v464
    %v466 = vand.u32 %v465, 4294901760
    %v467 = vsub.f32 %v465, %v466
    %v468 = vand.u32 %v467, 4294901760
    %469 = vmatpush2.xpose.msra.mxu0 %v468
    %470 = vmatprep.subr.mxu0 0.0
    %v471 = vand.u32 %v147, 4294901760
    %v472 = vsub.f32 %v147, %v471
    %v473 = vand.u32 %v472, 4294901760
    %v474 = vsub.f32 %v472, %v473
    %v475 = vand.u32 %v474, 4294901760
    %476 = vmatpush2.xpose.msra.mxu0 %v475
    %477 = vmatprep.subr.mxu0 0.0
    %v478 = vand.u32 %v144, 4294901760
    %v479 = vsub.f32 %v144, %v478
    %v480 = vand.u32 %v479, 4294901760
    %v481 = vsub.f32 %v479, %v480
    %v482 = vand.u32 %v481, 4294901760
    %483 = vmatpush2.xpose.msra.mxu0 %v482
    %484 = vmatprep.subr.mxu0 0.0
    %v485 = vand.u32 %v141, 4294901760
    %v486 = vsub.f32 %v141, %v485
    %v487 = vand.u32 %v486, 4294901760
    %v488 = vsub.f32 %v486, %v487
    %v489 = vand.u32 %v488, 4294901760
    %490 = vmatpush2.xpose.msra.mxu0 %v489
    %491 = vmatprep.subr.mxu0 0.0
    %v492 = vand.u32 %v138, 4294901760
    %v493 = vsub.f32 %v138, %v492
    %v494 = vand.u32 %v493, 4294901760
    %v495 = vsub.f32 %v493, %v494
    %v496 = vand.u32 %v495, 4294901760
    %497 = vmatpush2.xpose.msra.mxu0 %v496
    %498 = vmatprep.subr.mxu0 0.0
    %v499 = vand.u32 %v135, 4294901760
    %v500 = vsub.f32 %v135, %v499
    %v501 = vand.u32 %v500, 4294901760
    %v502 = vsub.f32 %v500, %v501
    %v503 = vand.u32 %v502, 4294901760
    %504 = vmatpush2.xpose.msra.mxu0 %v503
    %505 = vmatprep.subr.mxu0 0.0
    %v506 = vand.u32 %v132, 4294901760
    %v507 = vsub.f32 %v132, %v506
    %v508 = vand.u32 %v507, 4294901760
    %v509 = vsub.f32 %v507, %v508
    %v510 = vand.u32 %v509, 4294901760
    %511 = vmatpush2.xpose.msra.mxu0 %v510
    %512 = vmatprep.subr.mxu0 0.0
    %v513 = vand.u32 %v129, 4294901760
    %v514 = vsub.f32 %v129, %v513
    %v515 = vand.u32 %v514, 4294901760
    %v516 = vsub.f32 %v514, %v515
    %v517 = vand.u32 %v516, 4294901760
    %518 = vmatpush2.xpose.msra.mxu0 %v517
    %519 = vmatprep.mubr.f32.mxu0 0.0
    %v520 = vand.u32 %v75, 4294901760
    %521 = vmatmul.mubr.f32.gmra.mxu0 %v520
    %v522 = vpop.f32.mrf.mxu0
    %v523 = vadd.f32 %v280, %v522
    %v524 = vpop.f32.mrf.mxu0
    %v525 = vadd.f32 %v282, %v524
    %526 = vmatprep.mubr.f32.mxu0 0.0
    %v527 = vand.u32 %v78, 4294901760
    %528 = vmatmul.mubr.f32.gmra.mxu0 %v527
    %v529 = vpop.f32.mrf.mxu0
    %v530 = vadd.f32 %v291, %v529
    %v531 = vpop.f32.mrf.mxu0
    %v532 = vadd.f32 %v293, %v531
    %533 = vdwg.mxu0
    %534 = vmatprep.subr.mxu0 0.0
    %v535 = vand.u32 %v126, 4294901760
    %v536 = vsub.f32 %v126, %v535
    %537 = vmatpush1.xpose.msra.mxu0 %v536
    %538 = vmatprep.subr.mxu0 0.0
    %v539 = vand.u32 %v123, 4294901760
    %v540 = vsub.f32 %v123, %v539
    %541 = vmatpush1.xpose.msra.mxu0 %v540
    %542 = vmatprep.subr.mxu0 0.0
    %v543 = vand.u32 %v120, 4294901760
    %v544 = vsub.f32 %v120, %v543
    %545 = vmatpush1.xpose.msra.mxu0 %v544
    %546 = vmatprep.subr.mxu0 0.0
    %v547 = vand.u32 %v117, 4294901760
    %v548 = vsub.f32 %v117, %v547
    %549 = vmatpush1.xpose.msra.mxu0 %v548
    %550 = vmatprep.subr.mxu0 0.0
    %v551 = vand.u32 %v114, 4294901760
    %v552 = vsub.f32 %v114, %v551
    %553 = vmatpush1.xpose.msra.mxu0 %v552
    %554 = vmatprep.subr.mxu0 0.0
    %v555 = vand.u32 %v111, 4294901760
    %v556 = vsub.f32 %v111, %v555
    %557 = vmatpush1.xpose.msra.mxu0 %v556
    %558 = vmatprep.subr.mxu0 0.0
    %v559 = vand.u32 %v108, 4294901760
    %v560 = vsub.f32 %v108, %v559
    %561 = vmatpush1.xpose.msra.mxu0 %v560
    %562 = vmatprep.subr.mxu0 0.0
    %v563 = vand.u32 %v105, 4294901760
    %v564 = vsub.f32 %v105, %v563
    %565 = vmatpush1.xpose.msra.mxu0 %v564
    %566 = vmatprep.subr.mxu0 0.0
    %v567 = vand.u32 %v102, 4294901760
    %v568 = vsub.f32 %v102, %v567
    %569 = vmatpush1.xpose.msra.mxu0 %v568
    %570 = vmatprep.subr.mxu0 0.0
    %v571 = vand.u32 %v99, 4294901760
    %v572 = vsub.f32 %v99, %v571
    %573 = vmatpush1.xpose.msra.mxu0 %v572
    %574 = vmatprep.subr.mxu0 0.0
    %v575 = vand.u32 %v96, 4294901760
    %v576 = vsub.f32 %v96, %v575
    %577 = vmatpush1.xpose.msra.mxu0 %v576
    %578 = vmatprep.subr.mxu0 0.0
    %v579 = vand.u32 %v93, 4294901760
    %v580 = vsub.f32 %v93, %v579
    %581 = vmatpush1.xpose.msra.mxu0 %v580
    %582 = vmatprep.subr.mxu0 0.0
    %v583 = vand.u32 %v90, 4294901760
    %v584 = vsub.f32 %v90, %v583
    %585 = vmatpush1.xpose.msra.mxu0 %v584
    %586 = vmatprep.subr.mxu0 0.0
    %v587 = vand.u32 %v87, 4294901760
    %v588 = vsub.f32 %v87, %v587
    %589 = vmatpush1.xpose.msra.mxu0 %v588
    %590 = vmatprep.subr.mxu0 0.0
    %v591 = vand.u32 %v84, 4294901760
    %v592 = vsub.f32 %v84, %v591
    %593 = vmatpush1.xpose.msra.mxu0 %v592
    %594 = vmatprep.subr.mxu0 0.0
    %v595 = vand.u32 %v81, 4294901760
    %v596 = vsub.f32 %v81, %v595
    %597 = vmatpush1.xpose.msra.mxu0 %v596
    %598 = vmatprep.subr.mxu0 0.0
    %v599 = vand.u32 %v174, 4294901760
    %v600 = vsub.f32 %v174, %v599
    %601 = vmatpush2.xpose.msra.mxu0 %v600
    %602 = vmatprep.subr.mxu0 0.0
    %v603 = vand.u32 %v171, 4294901760
    %v604 = vsub.f32 %v171, %v603
    %605 = vmatpush2.xpose.msra.mxu0 %v604
    %606 = vmatprep.subr.mxu0 0.0
    %v607 = vand.u32 %v168, 4294901760
    %v608 = vsub.f32 %v168, %v607
    %609 = vmatpush2.xpose.msra.mxu0 %v608
    %610 = vmatprep.subr.mxu0 0.0
    %v611 = vand.u32 %v165, 4294901760
    %v612 = vsub.f32 %v165, %v611
    %613 = vmatpush2.xpose.msra.mxu0 %v612
    %614 = vmatprep.subr.mxu0 0.0
    %v615 = vand.u32 %v162, 4294901760
    %v616 = vsub.f32 %v162, %v615
    %617 = vmatpush2.xpose.msra.mxu0 %v616
    %618 = vmatprep.subr.mxu0 0.0
    %v619 = vand.u32 %v159, 4294901760
    %v620 = vsub.f32 %v159, %v619
    %621 = vmatpush2.xpose.msra.mxu0 %v620
    %622 = vmatprep.subr.mxu0 0.0
    %v623 = vand.u32 %v156, 4294901760
    %v624 = vsub.f32 %v156, %v623
    %625 = vmatpush2.xpose.msra.mxu0 %v624
    %626 = vmatprep.subr.mxu0 0.0
    %v627 = vand.u32 %v153, 4294901760
    %v628 = vsub.f32 %v153, %v627
    %629 = vmatpush2.xpose.msra.mxu0 %v628
    %630 = vmatprep.subr.mxu0 0.0
    %v631 = vand.u32 %v150, 4294901760
    %v632 = vsub.f32 %v150, %v631
    %633 = vmatpush2.xpose.msra.mxu0 %v632
    %634 = vmatprep.subr.mxu0 0.0
    %v635 = vand.u32 %v147, 4294901760
    %v636 = vsub.f32 %v147, %v635
    %637 = vmatpush2.xpose.msra.mxu0 %v636
    %638 = vmatprep.subr.mxu0 0.0
    %v639 = vand.u32 %v144, 4294901760
    %v640 = vsub.f32 %v144, %v639
    %641 = vmatpush2.xpose.msra.mxu0 %v640
    %642 = vmatprep.subr.mxu0 0.0
    %v643 = vand.u32 %v141, 4294901760
    %v644 = vsub.f32 %v141, %v643
    %645 = vmatpush2.xpose.msra.mxu0 %v644
    %646 = vmatprep.subr.mxu0 0.0
    %v647 = vand.u32 %v138, 4294901760
    %v648 = vsub.f32 %v138, %v647
    %649 = vmatpush2.xpose.msra.mxu0 %v648
    %650 = vmatprep.subr.mxu0 0.0
    %v651 = vand.u32 %v135, 4294901760
    %v652 = vsub.f32 %v135, %v651
    %653 = vmatpush2.xpose.msra.mxu0 %v652
    %654 = vmatprep.subr.mxu0 0.0
    %v655 = vand.u32 %v132, 4294901760
    %v656 = vsub.f32 %v132, %v655
    %657 = vmatpush2.xpose.msra.mxu0 %v656
    %658 = vmatprep.subr.mxu0 0.0
    %v659 = vand.u32 %v129, 4294901760
    %v660 = vsub.f32 %v129, %v659
    %661 = vmatpush2.xpose.msra.mxu0 %v660
    %662 = vmatprep.mubr.f32.mxu0 0.0
    %v663 = vand.u32 %v75, 4294901760
    %v664 = vsub.f32 %v75, %v663
    %665 = vmatmul.mubr.f32.gmra.mxu0 %v664
    %v666 = vpop.f32.mrf.mxu0
    %v667 = vadd.f32 %v523, %v666
    %v668 = vpop.f32.mrf.mxu0
    %v669 = vadd.f32 %v525, %v668
    %670 = vmatprep.mubr.f32.mxu0 0.0
    %v671 = vand.u32 %v78, 4294901760
    %v672 = vsub.f32 %v78, %v671
    %673 = vmatmul.mubr.f32.gmra.mxu0 %v672
    %v674 = vpop.f32.mrf.mxu0
    %v675 = vadd.f32 %v530, %v674
    %v676 = vpop.f32.mrf.mxu0
    %v677 = vadd.f32 %v532, %v676
    %678 = vdwg.mxu0
    %679 = vmatprep.subr.mxu0 0.0
    %v680 = vand.u32 %v126, 4294901760
    %681 = vmatpush1.xpose.msra.mxu0 %v680
    %682 = vmatprep.subr.mxu0 0.0
    %v683 = vand.u32 %v123, 4294901760
    %684 = vmatpush1.xpose.msra.mxu0 %v683
    %685 = vmatprep.subr.mxu0 0.0
    %v686 = vand.u32 %v120, 4294901760
    %687 = vmatpush1.xpose.msra.mxu0 %v686
    %688 = vmatprep.subr.mxu0 0.0
    %v689 = vand.u32 %v117, 4294901760
    %690 = vmatpush1.xpose.msra.mxu0 %v689
    %691 = vmatprep.subr.mxu0 0.0
    %v692 = vand.u32 %v114, 4294901760
    %693 = vmatpush1.xpose.msra.mxu0 %v692
    %694 = vmatprep.subr.mxu0 0.0
    %v695 = vand.u32 %v111, 4294901760
    %696 = vmatpush1.xpose.msra.mxu0 %v695
    %697 = vmatprep.subr.mxu0 0.0
    %v698 = vand.u32 %v108, 4294901760
    %699 = vmatpush1.xpose.msra.mxu0 %v698
    %700 = vmatprep.subr.mxu0 0.0
    %v701 = vand.u32 %v105, 4294901760
    %702 = vmatpush1.xpose.msra.mxu0 %v701
    %703 = vmatprep.subr.mxu0 0.0
    %v704 = vand.u32 %v102, 4294901760
    %705 = vmatpush1.xpose.msra.mxu0 %v704
    %706 = vmatprep.subr.mxu0 0.0
    %v707 = vand.u32 %v99, 4294901760
    %708 = vmatpush1.xpose.msra.mxu0 %v707
    %709 = vmatprep.subr.mxu0 0.0
    %v710 = vand.u32 %v96, 4294901760
    %711 = vmatpush1.xpose.msra.mxu0 %v710
    %712 = vmatprep.subr.mxu0 0.0
    %v713 = vand.u32 %v93, 4294901760
    %714 = vmatpush1.xpose.msra.mxu0 %v713
    %715 = vmatprep.subr.mxu0 0.0
    %v716 = vand.u32 %v90, 4294901760
    %717 = vmatpush1.xpose.msra.mxu0 %v716
    %718 = vmatprep.subr.mxu0 0.0
    %v719 = vand.u32 %v87, 4294901760
    %720 = vmatpush1.xpose.msra.mxu0 %v719
    %721 = vmatprep.subr.mxu0 0.0
    %v722 = vand.u32 %v84, 4294901760
    %723 = vmatpush1.xpose.msra.mxu0 %v722
    %724 = vmatprep.subr.mxu0 0.0
    %v725 = vand.u32 %v81, 4294901760
    %726 = vmatpush1.xpose.msra.mxu0 %v725
    %727 = vmatprep.subr.mxu0 0.0
    %v728 = vand.u32 %v174, 4294901760
    %729 = vmatpush2.xpose.msra.mxu0 %v728
    %730 = vmatprep.subr.mxu0 0.0
    %v731 = vand.u32 %v171, 4294901760
    %732 = vmatpush2.xpose.msra.mxu0 %v731
    %733 = vmatprep.subr.mxu0 0.0
    %v734 = vand.u32 %v168, 4294901760
    %735 = vmatpush2.xpose.msra.mxu0 %v734
    %736 = vmatprep.subr.mxu0 0.0
    %v737 = vand.u32 %v165, 4294901760
    %738 = vmatpush2.xpose.msra.mxu0 %v737
    %739 = vmatprep.subr.mxu0 0.0
    %v740 = vand.u32 %v162, 4294901760
    %741 = vmatpush2.xpose.msra.mxu0 %v740
    %742 = vmatprep.subr.mxu0 0.0
    %v743 = vand.u32 %v159, 4294901760
    %744 = vmatpush2.xpose.msra.mxu0 %v743
    %745 = vmatprep.subr.mxu0 0.0
    %v746 = vand.u32 %v156, 4294901760
    %747 = vmatpush2.xpose.msra.mxu0 %v746
    %748 = vmatprep.subr.mxu0 0.0
    %v749 = vand.u32 %v153, 4294901760
    %750 = vmatpush2.xpose.msra.mxu0 %v749
    %751 = vmatprep.subr.mxu0 0.0
    %v752 = vand.u32 %v150, 4294901760
    %753 = vmatpush2.xpose.msra.mxu0 %v752
    %754 = vmatprep.subr.mxu0 0.0
    %v755 = vand.u32 %v147, 4294901760
    %756 = vmatpush2.xpose.msra.mxu0 %v755
    %757 = vmatprep.subr.mxu0 0.0
    %v758 = vand.u32 %v144, 4294901760
    %759 = vmatpush2.xpose.msra.mxu0 %v758
    %760 = vmatprep.subr.mxu0 0.0
    %v761 = vand.u32 %v141, 4294901760
    %762 = vmatpush2.xpose.msra.mxu0 %v761
    %763 = vmatprep.subr.mxu0 0.0
    %v764 = vand.u32 %v138, 4294901760
    %765 = vmatpush2.xpose.msra.mxu0 %v764
    %766 = vmatprep.subr.mxu0 0.0
    %v767 = vand.u32 %v135, 4294901760
    %768 = vmatpush2.xpose.msra.mxu0 %v767
    %769 = vmatprep.subr.mxu0 0.0
    %v770 = vand.u32 %v132, 4294901760
    %771 = vmatpush2.xpose.msra.mxu0 %v770
    %772 = vmatprep.subr.mxu0 0.0
    %v773 = vand.u32 %v129, 4294901760
    %774 = vmatpush2.xpose.msra.mxu0 %v773
    %775 = vmatprep.mubr.f32.mxu0 0.0
    %v776 = vand.u32 %v75, 4294901760
    %v777 = vsub.f32 %v75, %v776
    %v778 = vand.u32 %v777, 4294901760
    %779 = vmatmul.mubr.f32.gmra.mxu0 %v778
    %v780 = vpop.f32.mrf.mxu0
    %v781 = vadd.f32 %v667, %v780
    %v782 = vpop.f32.mrf.mxu0
    %v783 = vadd.f32 %v669, %v782
    %784 = vmatprep.mubr.f32.mxu0 0.0
    %v785 = vand.u32 %v78, 4294901760
    %v786 = vsub.f32 %v78, %v785
    %v787 = vand.u32 %v786, 4294901760
    %788 = vmatmul.mubr.f32.gmra.mxu0 %v787
    %v789 = vpop.f32.mrf.mxu0
    %v790 = vadd.f32 %v675, %v789
    %v791 = vpop.f32.mrf.mxu0
    %v792 = vadd.f32 %v677, %v791
    %793 = vdwg.mxu0
    %794 = vmatprep.subr.mxu0 0.0
    %v795 = vand.u32 %v126, 4294901760
    %v796 = vsub.f32 %v126, %v795
    %v797 = vand.u32 %v796, 4294901760
    %798 = vmatpush1.xpose.msra.mxu0 %v797
    %799 = vmatprep.subr.mxu0 0.0
    %v800 = vand.u32 %v123, 4294901760
    %v801 = vsub.f32 %v123, %v800
    %v802 = vand.u32 %v801, 4294901760
    %803 = vmatpush1.xpose.msra.mxu0 %v802
    %804 = vmatprep.subr.mxu0 0.0
    %v805 = vand.u32 %v120, 4294901760
    %v806 = vsub.f32 %v120, %v805
    %v807 = vand.u32 %v806, 4294901760
    %808 = vmatpush1.xpose.msra.mxu0 %v807
    %809 = vmatprep.subr.mxu0 0.0
    %v810 = vand.u32 %v117, 4294901760
    %v811 = vsub.f32 %v117, %v810
    %v812 = vand.u32 %v811, 4294901760
    %813 = vmatpush1.xpose.msra.mxu0 %v812
    %814 = vmatprep.subr.mxu0 0.0
    %v815 = vand.u32 %v114, 4294901760
    %v816 = vsub.f32 %v114, %v815
    %v817 = vand.u32 %v816, 4294901760
    %818 = vmatpush1.xpose.msra.mxu0 %v817
    %819 = vmatprep.subr.mxu0 0.0
    %v820 = vand.u32 %v111, 4294901760
    %v821 = vsub.f32 %v111, %v820
    %v822 = vand.u32 %v821, 4294901760
    %823 = vmatpush1.xpose.msra.mxu0 %v822
    %824 = vmatprep.subr.mxu0 0.0
    %v825 = vand.u32 %v108, 4294901760
    %v826 = vsub.f32 %v108, %v825
    %v827 = vand.u32 %v826, 4294901760
    %828 = vmatpush1.xpose.msra.mxu0 %v827
    %829 = vmatprep.subr.mxu0 0.0
    %v830 = vand.u32 %v105, 4294901760
    %v831 = vsub.f32 %v105, %v830
    %v832 = vand.u32 %v831, 4294901760
    %833 = vmatpush1.xpose.msra.mxu0 %v832
    %834 = vmatprep.subr.mxu0 0.0
    %v835 = vand.u32 %v102, 4294901760
    %v836 = vsub.f32 %v102, %v835
    %v837 = vand.u32 %v836, 4294901760
    %838 = vmatpush1.xpose.msra.mxu0 %v837
    %839 = vmatprep.subr.mxu0 0.0
    %v840 = vand.u32 %v99, 4294901760
    %v841 = vsub.f32 %v99, %v840
    %v842 = vand.u32 %v841, 4294901760
    %843 = vmatpush1.xpose.msra.mxu0 %v842
    %844 = vmatprep.subr.mxu0 0.0
    %v845 = vand.u32 %v96, 4294901760
    %v846 = vsub.f32 %v96, %v845
    %v847 = vand.u32 %v846, 4294901760
    %848 = vmatpush1.xpose.msra.mxu0 %v847
    %849 = vmatprep.subr.mxu0 0.0
    %v850 = vand.u32 %v93, 4294901760
    %v851 = vsub.f32 %v93, %v850
    %v852 = vand.u32 %v851, 4294901760
    %853 = vmatpush1.xpose.msra.mxu0 %v852
    %854 = vmatprep.subr.mxu0 0.0
    %v855 = vand.u32 %v90, 4294901760
    %v856 = vsub.f32 %v90, %v855
    %v857 = vand.u32 %v856, 4294901760
    %858 = vmatpush1.xpose.msra.mxu0 %v857
    %859 = vmatprep.subr.mxu0 0.0
    %v860 = vand.u32 %v87, 4294901760
    %v861 = vsub.f32 %v87, %v860
    %v862 = vand.u32 %v861, 4294901760
    %863 = vmatpush1.xpose.msra.mxu0 %v862
    %864 = vmatprep.subr.mxu0 0.0
    %v865 = vand.u32 %v84, 4294901760
    %v866 = vsub.f32 %v84, %v865
    %v867 = vand.u32 %v866, 4294901760
    %868 = vmatpush1.xpose.msra.mxu0 %v867
    %869 = vmatprep.subr.mxu0 0.0
    %v870 = vand.u32 %v81, 4294901760
    %v871 = vsub.f32 %v81, %v870
    %v872 = vand.u32 %v871, 4294901760
    %873 = vmatpush1.xpose.msra.mxu0 %v872
    %874 = vmatprep.subr.mxu0 0.0
    %v875 = vand.u32 %v174, 4294901760
    %v876 = vsub.f32 %v174, %v875
    %v877 = vand.u32 %v876, 4294901760
    %878 = vmatpush2.xpose.msra.mxu0 %v877
    %879 = vmatprep.subr.mxu0 0.0
    %v880 = vand.u32 %v171, 4294901760
    %v881 = vsub.f32 %v171, %v880
    %v882 = vand.u32 %v881, 4294901760
    %883 = vmatpush2.xpose.msra.mxu0 %v882
    %884 = vmatprep.subr.mxu0 0.0
    %v885 = vand.u32 %v168, 4294901760
    %v886 = vsub.f32 %v168, %v885
    %v887 = vand.u32 %v886, 4294901760
    %888 = vmatpush2.xpose.msra.mxu0 %v887
    %889 = vmatprep.subr.mxu0 0.0
    %v890 = vand.u32 %v165, 4294901760
    %v891 = vsub.f32 %v165, %v890
    %v892 = vand.u32 %v891, 4294901760
    %893 = vmatpush2.xpose.msra.mxu0 %v892
    %894 = vmatprep.subr.mxu0 0.0
    %v895 = vand.u32 %v162, 4294901760
    %v896 = vsub.f32 %v162, %v895
    %v897 = vand.u32 %v896, 4294901760
    %898 = vmatpush2.xpose.msra.mxu0 %v897
    %899 = vmatprep.subr.mxu0 0.0
    %v900 = vand.u32 %v159, 4294901760
    %v901 = vsub.f32 %v159, %v900
    %v902 = vand.u32 %v901, 4294901760
    %903 = vmatpush2.xpose.msra.mxu0 %v902
    %904 = vmatprep.subr.mxu0 0.0
    %v905 = vand.u32 %v156, 4294901760
    %v906 = vsub.f32 %v156, %v905
    %v907 = vand.u32 %v906, 4294901760
    %908 = vmatpush2.xpose.msra.mxu0 %v907
    %909 = vmatprep.subr.mxu0 0.0
    %v910 = vand.u32 %v153, 4294901760
    %v911 = vsub.f32 %v153, %v910
    %v912 = vand.u32 %v911, 4294901760
    %913 = vmatpush2.xpose.msra.mxu0 %v912
    %914 = vmatprep.subr.mxu0 0.0
    %v915 = vand.u32 %v150, 4294901760
    %v916 = vsub.f32 %v150, %v915
    %v917 = vand.u32 %v916, 4294901760
    %918 = vmatpush2.xpose.msra.mxu0 %v917
    %919 = vmatprep.subr.mxu0 0.0
    %v920 = vand.u32 %v147, 4294901760
    %v921 = vsub.f32 %v147, %v920
    %v922 = vand.u32 %v921, 4294901760
    %923 = vmatpush2.xpose.msra.mxu0 %v922
    %924 = vmatprep.subr.mxu0 0.0
    %v925 = vand.u32 %v144, 4294901760
    %v926 = vsub.f32 %v144, %v925
    %v927 = vand.u32 %v926, 4294901760
    %928 = vmatpush2.xpose.msra.mxu0 %v927
    %929 = vmatprep.subr.mxu0 0.0
    %v930 = vand.u32 %v141, 4294901760
    %v931 = vsub.f32 %v141, %v930
    %v932 = vand.u32 %v931, 4294901760
    %933 = vmatpush2.xpose.msra.mxu0 %v932
    %934 = vmatprep.subr.mxu0 0.0
    %v935 = vand.u32 %v138, 4294901760
    %v936 = vsub.f32 %v138, %v935
    %v937 = vand.u32 %v936, 4294901760
    %938 = vmatpush2.xpose.msra.mxu0 %v937
    %939 = vmatprep.subr.mxu0 0.0
    %v940 = vand.u32 %v135, 4294901760
    %v941 = vsub.f32 %v135, %v940
    %v942 = vand.u32 %v941, 4294901760
    %943 = vmatpush2.xpose.msra.mxu0 %v942
    %944 = vmatprep.subr.mxu0 0.0
    %v945 = vand.u32 %v132, 4294901760
    %v946 = vsub.f32 %v132, %v945
    %v947 = vand.u32 %v946, 4294901760
    %948 = vmatpush2.xpose.msra.mxu0 %v947
    %949 = vmatprep.subr.mxu0 0.0
    %v950 = vand.u32 %v129, 4294901760
    %v951 = vsub.f32 %v129, %v950
    %v952 = vand.u32 %v951, 4294901760
    %953 = vmatpush2.xpose.msra.mxu0 %v952
    %954 = vmatprep.mubr.f32.mxu0 0.0
    %v955 = vand.u32 %v75, 4294901760
    %956 = vmatmul.mubr.f32.gmra.mxu0 %v955
    %v957 = vpop.f32.mrf.mxu0
    %v958 = vadd.f32 %v781, %v957
    %v959 = vpop.f32.mrf.mxu0
    %v960 = vadd.f32 %v783, %v959
    %961 = vmatprep.mubr.f32.mxu0 0.0
    %v962 = vand.u32 %v78, 4294901760
    %963 = vmatmul.mubr.f32.gmra.mxu0 %v962
    %v964 = vpop.f32.mrf.mxu0
    %v965 = vadd.f32 %v790, %v964
    %v966 = vpop.f32.mrf.mxu0
    %v967 = vadd.f32 %v792, %v966
    %968 = vdwg.mxu0
    %969 = vmatprep.subr.mxu0 0.0
    %v970 = vand.u32 %v126, 4294901760
    %971 = vmatpush1.xpose.msra.mxu0 %v970
    %972 = vmatprep.subr.mxu0 0.0
    %v973 = vand.u32 %v123, 4294901760
    %974 = vmatpush1.xpose.msra.mxu0 %v973
    %975 = vmatprep.subr.mxu0 0.0
    %v976 = vand.u32 %v120, 4294901760
    %977 = vmatpush1.xpose.msra.mxu0 %v976
    %978 = vmatprep.subr.mxu0 0.0
    %v979 = vand.u32 %v117, 4294901760
    %980 = vmatpush1.xpose.msra.mxu0 %v979
    %981 = vmatprep.subr.mxu0 0.0
    %v982 = vand.u32 %v114, 4294901760
    %983 = vmatpush1.xpose.msra.mxu0 %v982
    %984 = vmatprep.subr.mxu0 0.0
    %v985 = vand.u32 %v111, 4294901760
    %986 = vmatpush1.xpose.msra.mxu0 %v985
    %987 = vmatprep.subr.mxu0 0.0
    %v988 = vand.u32 %v108, 4294901760
    %989 = vmatpush1.xpose.msra.mxu0 %v988
    %990 = vmatprep.subr.mxu0 0.0
    %v991 = vand.u32 %v105, 4294901760
    %992 = vmatpush1.xpose.msra.mxu0 %v991
    %993 = vmatprep.subr.mxu0 0.0
    %v994 = vand.u32 %v102, 4294901760
    %995 = vmatpush1.xpose.msra.mxu0 %v994
    %996 = vmatprep.subr.mxu0 0.0
    %v997 = vand.u32 %v99, 4294901760
    %998 = vmatpush1.xpose.msra.mxu0 %v997
    %999 = vmatprep.subr.mxu0 0.0
    %v1000 = vand.u32 %v96, 4294901760
    %1001 = vmatpush1.xpose.msra.mxu0 %v1000
    %1002 = vmatprep.subr.mxu0 0.0
    %v1003 = vand.u32 %v93, 4294901760
    %1004 = vmatpush1.xpose.msra.mxu0 %v1003
    %1005 = vmatprep.subr.mxu0 0.0
    %v1006 = vand.u32 %v90, 4294901760
    %1007 = vmatpush1.xpose.msra.mxu0 %v1006
    %1008 = vmatprep.subr.mxu0 0.0
    %v1009 = vand.u32 %v87, 4294901760
    %1010 = vmatpush1.xpose.msra.mxu0 %v1009
    %1011 = vmatprep.subr.mxu0 0.0
    %v1012 = vand.u32 %v84, 4294901760
    %1013 = vmatpush1.xpose.msra.mxu0 %v1012
    %1014 = vmatprep.subr.mxu0 0.0
    %v1015 = vand.u32 %v81, 4294901760
    %1016 = vmatpush1.xpose.msra.mxu0 %v1015
    %1017 = vmatprep.subr.mxu0 0.0
    %v1018 = vand.u32 %v174, 4294901760
    %1019 = vmatpush2.xpose.msra.mxu0 %v1018
    %1020 = vmatprep.subr.mxu0 0.0
    %v1021 = vand.u32 %v171, 4294901760
    %1022 = vmatpush2.xpose.msra.mxu0 %v1021
    %1023 = vmatprep.subr.mxu0 0.0
    %v1024 = vand.u32 %v168, 4294901760
    %1025 = vmatpush2.xpose.msra.mxu0 %v1024
    %1026 = vmatprep.subr.mxu0 0.0
    %v1027 = vand.u32 %v165, 4294901760
    %1028 = vmatpush2.xpose.msra.mxu0 %v1027
    %1029 = vmatprep.subr.mxu0 0.0
    %v1030 = vand.u32 %v162, 4294901760
    %1031 = vmatpush2.xpose.msra.mxu0 %v1030
    %1032 = vmatprep.subr.mxu0 0.0
    %v1033 = vand.u32 %v159, 4294901760
    %1034 = vmatpush2.xpose.msra.mxu0 %v1033
    %1035 = vmatprep.subr.mxu0 0.0
    %v1036 = vand.u32 %v156, 4294901760
    %1037 = vmatpush2.xpose.msra.mxu0 %v1036
    %1038 = vmatprep.subr.mxu0 0.0
    %v1039 = vand.u32 %v153, 4294901760
    %1040 = vmatpush2.xpose.msra.mxu0 %v1039
    %1041 = vmatprep.subr.mxu0 0.0
    %v1042 = vand.u32 %v150, 4294901760
    %1043 = vmatpush2.xpose.msra.mxu0 %v1042
    %1044 = vmatprep.subr.mxu0 0.0
    %v1045 = vand.u32 %v147, 4294901760
    %1046 = vmatpush2.xpose.msra.mxu0 %v1045
    %1047 = vmatprep.subr.mxu0 0.0
    %v1048 = vand.u32 %v144, 4294901760
    %1049 = vmatpush2.xpose.msra.mxu0 %v1048
    %1050 = vmatprep.subr.mxu0 0.0
    %v1051 = vand.u32 %v141, 4294901760
    %1052 = vmatpush2.xpose.msra.mxu0 %v1051
    %1053 = vmatprep.subr.mxu0 0.0
    %v1054 = vand.u32 %v138, 4294901760
    %1055 = vmatpush2.xpose.msra.mxu0 %v1054
    %1056 = vmatprep.subr.mxu0 0.0
    %v1057 = vand.u32 %v135, 4294901760
    %1058 = vmatpush2.xpose.msra.mxu0 %v1057
    %1059 = vmatprep.subr.mxu0 0.0
    %v1060 = vand.u32 %v132, 4294901760
    %1061 = vmatpush2.xpose.msra.mxu0 %v1060
    %1062 = vmatprep.subr.mxu0 0.0
    %v1063 = vand.u32 %v129, 4294901760
    %1064 = vmatpush2.xpose.msra.mxu0 %v1063
    %1065 = vmatprep.mubr.f32.mxu0 0.0
    %v1066 = vand.u32 %v75, 4294901760
    %1067 = vmatmul.mubr.f32.gmra.mxu0 %v1066
    %v1068 = vpop.f32.mrf.mxu0
    %v1069 = vadd.f32 %v958, %v1068
    %v1070 = vpop.f32.mrf.mxu0
    %v1071 = vadd.f32 %v960, %v1070
    %1072 = vmatprep.mubr.f32.mxu0 0.0
    %v1073 = vand.u32 %v78, 4294901760
    %1074 = vmatmul.mubr.f32.gmra.mxu0 %v1073
    %v1075 = vpop.f32.mrf.mxu0
    %v1076 = vadd.f32 %v965, %v1075
    %v1077 = vpop.f32.mrf.mxu0
    %v1078 = vadd.f32 %v967, %v1077
    %1079 = vdwg.mxu0
    %v1080 = vmax.f32 %v1069, 0.0
    %v1081 = vmax.f32 %v1071, 0.0
    %v1082 = vmax.f32 %v1076, 0.0
    %v1083 = vmax.f32 %v1078, 0.0
    %v1084 = vld [vmem:[%s3] sm:$0x1f]
    %v1085 = vld [vmem:[%s4] sm:$0x1f]
    %1087 = vset.pattern.permute.xlu0 0
    %1088 = vperm.xlu0 %1087, %v1085
    %v1089 = vpop.permute.xlu0 %1088
    %vm1091 = vcmask 80896
    %v1093 = vsel %vm1091, %v1084, 0
    %vm1095 = vcmask 1041408
    %v1097 = vsel %vm1095, %v1082, 0
    %v1100 = vsel %vm1095, %v1083, 0
    %1102 = vmatprep.subr.mxu0 0.0
    %1103 = vmatpush1.msra.mxu0 0.0
    %1104 = vmatprep.subr.mxu0 0.0
    %1105 = vmatpush1.msra.mxu0 0.0
    %1106 = vmatprep.subr.mxu0 0.0
    %1107 = vmatpush1.msra.mxu0 0.0
    %1108 = vmatprep.subr.mxu0 0.0
    %1109 = vmatpush1.msra.mxu0 0.0
    %1110 = vmatprep.subr.mxu0 0.0
    %1111 = vmatpush1.msra.mxu0 0.0
    %1112 = vmatprep.subr.mxu0 0.0
    %1113 = vmatpush1.msra.mxu0 0.0
    %1114 = vmatprep.subr.mxu0 0.0
    %1115 = vmatpush1.msra.mxu0 0.0
    %1116 = vmatprep.subr.mxu0 0.0
    %1117 = vmatpush1.msra.mxu0 0.0
    %1118 = vmatprep.subr.mxu0 0.0
    %1119 = vmatpush1.msra.mxu0 0.0
    %1120 = vmatprep.subr.mxu0 0.0
    %1121 = vmatpush1.msra.mxu0 0.0
    %1122 = vmatprep.subr.mxu0 0.0
    %1123 = vmatpush1.msra.mxu0 0.0
    %1124 = vmatprep.subr.mxu0 0.0
    %1125 = vmatpush1.msra.mxu0 0.0
    %1126 = vmatprep.subr.mxu0 0.0
    %1127 = vmatpush1.msra.mxu0 0.0
    %1128 = vmatprep.subr.mxu0 0.0
    %1129 = vmatpush1.msra.mxu0 0.0
    %v1130 = vand.u32 %v1100, 4294901760
    %1131 = vmatprep.subr.mxu0 %v1130
    %v1132 = vand.u32 %v1097, 4294901760
    %1133 = vmatpush1.msra.mxu0 %v1132
    %v1134 = vand.u32 %v1081, 4294901760
    %1135 = vmatprep.subr.mxu0 %v1134
    %v1136 = vand.u32 %v1080, 4294901760
    %1137 = vmatpush1.msra.mxu0 %v1136
    %1138 = vmatprep.subr.mxu0 0.0
    %1139 = vmatpush2.msra.mxu0 0.0
    %1140 = vmatprep.subr.mxu0 0.0
    %1141 = vmatpush2.msra.mxu0 0.0
    %1142 = vmatprep.subr.mxu0 0.0
    %1143 = vmatpush2.msra.mxu0 0.0
    %1144 = vmatprep.subr.mxu0 0.0
    %1145 = vmatpush2.msra.mxu0 0.0
    %1146 = vmatprep.subr.mxu0 0.0
    %1147 = vmatpush2.msra.mxu0 0.0
    %1148 = vmatprep.subr.mxu0 0.0
    %1149 = vmatpush2.msra.mxu0 0.0
    %1150 = vmatprep.subr.mxu0 0.0
    %1151 = vmatpush2.msra.mxu0 0.0
    %1152 = vmatprep.subr.mxu0 0.0
    %1153 = vmatpush2.msra.mxu0 0.0
    %1154 = vmatprep.subr.mxu0 0.0
    %1155 = vmatpush2.msra.mxu0 0.0
    %1156 = vmatprep.subr.mxu0 0.0
    %1157 = vmatpush2.msra.mxu0 0.0
    %1158 = vmatprep.subr.mxu0 0.0
    %1159 = vmatpush2.msra.mxu0 0.0
    %1160 = vmatprep.subr.mxu0 0.0
    %1161 = vmatpush2.msra.mxu0 0.0
    %1162 = vmatprep.subr.mxu0 0.0
    %1163 = vmatpush2.msra.mxu0 0.0
    %1164 = vmatprep.subr.mxu0 0.0
    %1165 = vmatpush2.msra.mxu0 0.0
    %1166 = vmatprep.subr.mxu0 0.0
    %1167 = vmatpush2.msra.mxu0 0.0
    %1168 = vmatprep.subr.mxu0 0.0
    %1169 = vmatpush2.msra.mxu0 0.0
    %1170 = vmatprep.mubr.f32.mxu0 0.0
    %v1171 = vand.u32 %v1093, 4294901760
    %v1172 = vsub.f32 %v1093, %v1171
    %v1173 = vand.u32 %v1172, 4294901760
    %v1174 = vsub.f32 %v1172, %v1173
    %v1175 = vand.u32 %v1174, 4294901760
    %1176 = vmatmul.mubr.f32.gmra.mxu0 %v1175
    %v1177 = vpop.f32.mrf.mxu0
    %v1178 = vadd.f32 %v1089, %v1177
    %v1179 = vpop.f32.mrf.mxu0
    %v1180 = vadd.f32 %v1089, %v1179
    %1181 = vdwg.mxu0
    %1182 = vmatprep.subr.mxu0 0.0
    %1183 = vmatpush1.msra.mxu0 0.0
    %1184 = vmatprep.subr.mxu0 0.0
    %1185 = vmatpush1.msra.mxu0 0.0
    %1186 = vmatprep.subr.mxu0 0.0
    %1187 = vmatpush1.msra.mxu0 0.0
    %1188 = vmatprep.subr.mxu0 0.0
    %1189 = vmatpush1.msra.mxu0 0.0
    %1190 = vmatprep.subr.mxu0 0.0
    %1191 = vmatpush1.msra.mxu0 0.0
    %1192 = vmatprep.subr.mxu0 0.0
    %1193 = vmatpush1.msra.mxu0 0.0
    %1194 = vmatprep.subr.mxu0 0.0
    %1195 = vmatpush1.msra.mxu0 0.0
    %1196 = vmatprep.subr.mxu0 0.0
    %1197 = vmatpush1.msra.mxu0 0.0
    %1198 = vmatprep.subr.mxu0 0.0
    %1199 = vmatpush1.msra.mxu0 0.0
    %1200 = vmatprep.subr.mxu0 0.0
    %1201 = vmatpush1.msra.mxu0 0.0
    %1202 = vmatprep.subr.mxu0 0.0
    %1203 = vmatpush1.msra.mxu0 0.0
    %1204 = vmatprep.subr.mxu0 0.0
    %1205 = vmatpush1.msra.mxu0 0.0
    %1206 = vmatprep.subr.mxu0 0.0
    %1207 = vmatpush1.msra.mxu0 0.0
    %1208 = vmatprep.subr.mxu0 0.0
    %1209 = vmatpush1.msra.mxu0 0.0
    %v1210 = vand.u32 %v1100, 4294901760
    %v1211 = vsub.f32 %v1100, %v1210
    %v1212 = vand.u32 %v1211, 4294901760
    %v1213 = vsub.f32 %v1211, %v1212
    %v1214 = vand.u32 %v1213, 4294901760
    %1215 = vmatprep.subr.mxu0 %v1214
    %v1216 = vand.u32 %v1097, 4294901760
    %v1217 = vsub.f32 %v1097, %v1216
    %v1218 = vand.u32 %v1217, 4294901760
    %v1219 = vsub.f32 %v1217, %v1218
    %v1220 = vand.u32 %v1219, 4294901760
    %1221 = vmatpush1.msra.mxu0 %v1220
    %v1222 = vand.u32 %v1081, 4294901760
    %v1223 = vsub.f32 %v1081, %v1222
    %v1224 = vand.u32 %v1223, 4294901760
    %v1225 = vsub.f32 %v1223, %v1224
    %v1226 = vand.u32 %v1225, 4294901760
    %1227 = vmatprep.subr.mxu0 %v1226
    %v1228 = vand.u32 %v1080, 4294901760
    %v1229 = vsub.f32 %v1080, %v1228
    %v1230 = vand.u32 %v1229, 4294901760
    %v1231 = vsub.f32 %v1229, %v1230
    %v1232 = vand.u32 %v1231, 4294901760
    %1233 = vmatpush1.msra.mxu0 %v1232
    %1234 = vmatprep.subr.mxu0 0.0
    %1235 = vmatpush2.msra.mxu0 0.0
    %1236 = vmatprep.subr.mxu0 0.0
    %1237 = vmatpush2.msra.mxu0 0.0
    %1238 = vmatprep.subr.mxu0 0.0
    %1239 = vmatpush2.msra.mxu0 0.0
    %1240 = vmatprep.subr.mxu0 0.0
    %1241 = vmatpush2.msra.mxu0 0.0
    %1242 = vmatprep.subr.mxu0 0.0
    %1243 = vmatpush2.msra.mxu0 0.0
    %1244 = vmatprep.subr.mxu0 0.0
    %1245 = vmatpush2.msra.mxu0 0.0
    %1246 = vmatprep.subr.mxu0 0.0
    %1247 = vmatpush2.msra.mxu0 0.0
    %1248 = vmatprep.subr.mxu0 0.0
    %1249 = vmatpush2.msra.mxu0 0.0
    %1250 = vmatprep.subr.mxu0 0.0
    %1251 = vmatpush2.msra.mxu0 0.0
    %1252 = vmatprep.subr.mxu0 0.0
    %1253 = vmatpush2.msra.mxu0 0.0
    %1254 = vmatprep.subr.mxu0 0.0
    %1255 = vmatpush2.msra.mxu0 0.0
    %1256 = vmatprep.subr.mxu0 0.0
    %1257 = vmatpush2.msra.mxu0 0.0
    %1258 = vmatprep.subr.mxu0 0.0
    %1259 = vmatpush2.msra.mxu0 0.0
    %1260 = vmatprep.subr.mxu0 0.0
    %1261 = vmatpush2.msra.mxu0 0.0
    %1262 = vmatprep.subr.mxu0 0.0
    %1263 = vmatpush2.msra.mxu0 0.0
    %1264 = vmatprep.subr.mxu0 0.0
    %1265 = vmatpush2.msra.mxu0 0.0
    %1266 = vmatprep.mubr.f32.mxu0 0.0
    %v1267 = vand.u32 %v1093, 4294901760
    %1268 = vmatmul.mubr.f32.gmra.mxu0 %v1267
    %v1269 = vpop.f32.mrf.mxu0
    %v1270 = vadd.f32 %v1178, %v1269
    %v1271 = vpop.f32.mrf.mxu0
    %v1272 = vadd.f32 %v1180, %v1271
    %1273 = vdwg.mxu0
    %1274 = vmatprep.subr.mxu0 0.0
    %1275 = vmatpush1.msra.mxu0 0.0
    %1276 = vmatprep.subr.mxu0 0.0
    %1277 = vmatpush1.msra.mxu0 0.0
    %1278 = vmatprep.subr.mxu0 0.0
    %1279 = vmatpush1.msra.mxu0 0.0
    %1280 = vmatprep.subr.mxu0 0.0
    %1281 = vmatpush1.msra.mxu0 0.0
    %1282 = vmatprep.subr.mxu0 0.0
    %1283 = vmatpush1.msra.mxu0 0.0
    %1284 = vmatprep.subr.mxu0 0.0
    %1285 = vmatpush1.msra.mxu0 0.0
    %1286 = vmatprep.subr.mxu0 0.0
    %1287 = vmatpush1.msra.mxu0 0.0
    %1288 = vmatprep.subr.mxu0 0.0
    %1289 = vmatpush1.msra.mxu0 0.0
    %1290 = vmatprep.subr.mxu0 0.0
    %1291 = vmatpush1.msra.mxu0 0.0
    %1292 = vmatprep.subr.mxu0 0.0
    %1293 = vmatpush1.msra.mxu0 0.0
    %1294 = vmatprep.subr.mxu0 0.0
    %1295 = vmatpush1.msra.mxu0 0.0
    %1296 = vmatprep.subr.mxu0 0.0
    %1297 = vmatpush1.msra.mxu0 0.0
    %1298 = vmatprep.subr.mxu0 0.0
    %1299 = vmatpush1.msra.mxu0 0.0
    %1300 = vmatprep.subr.mxu0 0.0
    %1301 = vmatpush1.msra.mxu0 0.0
    %v1302 = vand.u32 %v1100, 4294901760
    %v1303 = vsub.f32 %v1100, %v1302
    %1304 = vmatprep.subr.mxu0 %v1303
    %v1305 = vand.u32 %v1097, 4294901760
    %v1306 = vsub.f32 %v1097, %v1305
    %1307 = vmatpush1.msra.mxu0 %v1306
    %v1308 = vand.u32 %v1081, 4294901760
    %v1309 = vsub.f32 %v1081, %v1308
    %1310 = vmatprep.subr.mxu0 %v1309
    %v1311 = vand.u32 %v1080, 4294901760
    %v1312 = vsub.f32 %v1080, %v1311
    %1313 = vmatpush1.msra.mxu0 %v1312
    %1314 = vmatprep.subr.mxu0 0.0
    %1315 = vmatpush2.msra.mxu0 0.0
    %1316 = vmatprep.subr.mxu0 0.0
    %1317 = vmatpush2.msra.mxu0 0.0
    %1318 = vmatprep.subr.mxu0 0.0
    %1319 = vmatpush2.msra.mxu0 0.0
    %1320 = vmatprep.subr.mxu0 0.0
    %1321 = vmatpush2.msra.mxu0 0.0
    %1322 = vmatprep.subr.mxu0 0.0
    %1323 = vmatpush2.msra.mxu0 0.0
    %1324 = vmatprep.subr.mxu0 0.0
    %1325 = vmatpush2.msra.mxu0 0.0
    %1326 = vmatprep.subr.mxu0 0.0
    %1327 = vmatpush2.msra.mxu0 0.0
    %1328 = vmatprep.subr.mxu0 0.0
    %1329 = vmatpush2.msra.mxu0 0.0
    %1330 = vmatprep.subr.mxu0 0.0
    %1331 = vmatpush2.msra.mxu0 0.0
    %1332 = vmatprep.subr.mxu0 0.0
    %1333 = vmatpush2.msra.mxu0 0.0
    %1334 = vmatprep.subr.mxu0 0.0
    %1335 = vmatpush2.msra.mxu0 0.0
    %1336 = vmatprep.subr.mxu0 0.0
    %1337 = vmatpush2.msra.mxu0 0.0
    %1338 = vmatprep.subr.mxu0 0.0
    %1339 = vmatpush2.msra.mxu0 0.0
    %1340 = vmatprep.subr.mxu0 0.0
    %1341 = vmatpush2.msra.mxu0 0.0
    %1342 = vmatprep.subr.mxu0 0.0
    %1343 = vmatpush2.msra.mxu0 0.0
    %1344 = vmatprep.subr.mxu0 0.0
    %1345 = vmatpush2.msra.mxu0 0.0
    %1346 = vmatprep.mubr.f32.mxu0 0.0
    %v1347 = vand.u32 %v1093, 4294901760
    %v1348 = vsub.f32 %v1093, %v1347
    %1349 = vmatmul.mubr.f32.gmra.mxu0 %v1348
    %v1350 = vpop.f32.mrf.mxu0
    %v1351 = vadd.f32 %v1270, %v1350
    %v1352 = vpop.f32.mrf.mxu0
    %v1353 = vadd.f32 %v1272, %v1352
    %1354 = vdwg.mxu0
    %1355 = vmatprep.subr.mxu0 0.0
    %1356 = vmatpush1.msra.mxu0 0.0
    %1357 = vmatprep.subr.mxu0 0.0
    %1358 = vmatpush1.msra.mxu0 0.0
    %1359 = vmatprep.subr.mxu0 0.0
    %1360 = vmatpush1.msra.mxu0 0.0
    %1361 = vmatprep.subr.mxu0 0.0
    %1362 = vmatpush1.msra.mxu0 0.0
    %1363 = vmatprep.subr.mxu0 0.0
    %1364 = vmatpush1.msra.mxu0 0.0
    %1365 = vmatprep.subr.mxu0 0.0
    %1366 = vmatpush1.msra.mxu0 0.0
    %1367 = vmatprep.subr.mxu0 0.0
    %1368 = vmatpush1.msra.mxu0 0.0
    %1369 = vmatprep.subr.mxu0 0.0
    %1370 = vmatpush1.msra.mxu0 0.0
    %1371 = vmatprep.subr.mxu0 0.0
    %1372 = vmatpush1.msra.mxu0 0.0
    %1373 = vmatprep.subr.mxu0 0.0
    %1374 = vmatpush1.msra.mxu0 0.0
    %1375 = vmatprep.subr.mxu0 0.0
    %1376 = vmatpush1.msra.mxu0 0.0
    %1377 = vmatprep.subr.mxu0 0.0
    %1378 = vmatpush1.msra.mxu0 0.0
    %1379 = vmatprep.subr.mxu0 0.0
    %1380 = vmatpush1.msra.mxu0 0.0
    %1381 = vmatprep.subr.mxu0 0.0
    %1382 = vmatpush1.msra.mxu0 0.0
    %v1383 = vand.u32 %v1100, 4294901760
    %1384 = vmatprep.subr.mxu0 %v1383
    %v1385 = vand.u32 %v1097, 4294901760
    %1386 = vmatpush1.msra.mxu0 %v1385
    %v1387 = vand.u32 %v1081, 4294901760
    %1388 = vmatprep.subr.mxu0 %v1387
    %v1389 = vand.u32 %v1080, 4294901760
    %1390 = vmatpush1.msra.mxu0 %v1389
    %1391 = vmatprep.subr.mxu0 0.0
    %1392 = vmatpush2.msra.mxu0 0.0
    %1393 = vmatprep.subr.mxu0 0.0
    %1394 = vmatpush2.msra.mxu0 0.0
    %1395 = vmatprep.subr.mxu0 0.0
    %1396 = vmatpush2.msra.mxu0 0.0
    %1397 = vmatprep.subr.mxu0 0.0
    %1398 = vmatpush2.msra.mxu0 0.0
    %1399 = vmatprep.subr.mxu0 0.0
    %1400 = vmatpush2.msra.mxu0 0.0
    %1401 = vmatprep.subr.mxu0 0.0
    %1402 = vmatpush2.msra.mxu0 0.0
    %1403 = vmatprep.subr.mxu0 0.0
    %1404 = vmatpush2.msra.mxu0 0.0
    %1405 = vmatprep.subr.mxu0 0.0
    %1406 = vmatpush2.msra.mxu0 0.0
    %1407 = vmatprep.subr.mxu0 0.0
    %1408 = vmatpush2.msra.mxu0 0.0
    %1409 = vmatprep.subr.mxu0 0.0
    %1410 = vmatpush2.msra.mxu0 0.0
    %1411 = vmatprep.subr.mxu0 0.0
    %1412 = vmatpush2.msra.mxu0 0.0
    %1413 = vmatprep.subr.mxu0 0.0
    %1414 = vmatpush2.msra.mxu0 0.0
    %1415 = vmatprep.subr.mxu0 0.0
    %1416 = vmatpush2.msra.mxu0 0.0
    %1417 = vmatprep.subr.mxu0 0.0
    %1418 = vmatpush2.msra.mxu0 0.0
    %1419 = vmatprep.subr.mxu0 0.0
    %1420 = vmatpush2.msra.mxu0 0.0
    %1421 = vmatprep.subr.mxu0 0.0
    %1422 = vmatpush2.msra.mxu0 0.0
    %1423 = vmatprep.mubr.f32.mxu0 0.0
    %v1424 = vand.u32 %v1093, 4294901760
    %v1425 = vsub.f32 %v1093, %v1424
    %v1426 = vand.u32 %v1425, 4294901760
    %1427 = vmatmul.mubr.f32.gmra.mxu0 %v1426
    %v1428 = vpop.f32.mrf.mxu0
    %v1429 = vadd.f32 %v1351, %v1428
    %v1430 = vpop.f32.mrf.mxu0
    %v1431 = vadd.f32 %v1353, %v1430
    %1432 = vdwg.mxu0
    %1433 = vmatprep.subr.mxu0 0.0
    %1434 = vmatpush1.msra.mxu0 0.0
    %1435 = vmatprep.subr.mxu0 0.0
    %1436 = vmatpush1.msra.mxu0 0.0
    %1437 = vmatprep.subr.mxu0 0.0
    %1438 = vmatpush1.msra.mxu0 0.0
    %1439 = vmatprep.subr.mxu0 0.0
    %1440 = vmatpush1.msra.mxu0 0.0
    %1441 = vmatprep.subr.mxu0 0.0
    %1442 = vmatpush1.msra.mxu0 0.0
    %1443 = vmatprep.subr.mxu0 0.0
    %1444 = vmatpush1.msra.mxu0 0.0
    %1445 = vmatprep.subr.mxu0 0.0
    %1446 = vmatpush1.msra.mxu0 0.0
    %1447 = vmatprep.subr.mxu0 0.0
    %1448 = vmatpush1.msra.mxu0 0.0
    %1449 = vmatprep.subr.mxu0 0.0
    %1450 = vmatpush1.msra.mxu0 0.0
    %1451 = vmatprep.subr.mxu0 0.0
    %1452 = vmatpush1.msra.mxu0 0.0
    %1453 = vmatprep.subr.mxu0 0.0
    %1454 = vmatpush1.msra.mxu0 0.0
    %1455 = vmatprep.subr.mxu0 0.0
    %1456 = vmatpush1.msra.mxu0 0.0
    %1457 = vmatprep.subr.mxu0 0.0
    %1458 = vmatpush1.msra.mxu0 0.0
    %1459 = vmatprep.subr.mxu0 0.0
    %1460 = vmatpush1.msra.mxu0 0.0
    %v1461 = vand.u32 %v1100, 4294901760
    %v1462 = vsub.f32 %v1100, %v1461
    %v1463 = vand.u32 %v1462, 4294901760
    %1464 = vmatprep.subr.mxu0 %v1463
    %v1465 = vand.u32 %v1097, 4294901760
    %v1466 = vsub.f32 %v1097, %v1465
    %v1467 = vand.u32 %v1466, 4294901760
    %1468 = vmatpush1.msra.mxu0 %v1467
    %v1469 = vand.u32 %v1081, 4294901760
    %v1470 = vsub.f32 %v1081, %v1469
    %v1471 = vand.u32 %v1470, 4294901760
    %1472 = vmatprep.subr.mxu0 %v1471
    %v1473 = vand.u32 %v1080, 4294901760
    %v1474 = vsub.f32 %v1080, %v1473
    %v1475 = vand.u32 %v1474, 4294901760
    %1476 = vmatpush1.msra.mxu0 %v1475
    %1477 = vmatprep.subr.mxu0 0.0
    %1478 = vmatpush2.msra.mxu0 0.0
    %1479 = vmatprep.subr.mxu0 0.0
    %1480 = vmatpush2.msra.mxu0 0.0
    %1481 = vmatprep.subr.mxu0 0.0
    %1482 = vmatpush2.msra.mxu0 0.0
    %1483 = vmatprep.subr.mxu0 0.0
    %1484 = vmatpush2.msra.mxu0 0.0
    %1485 = vmatprep.subr.mxu0 0.0
    %1486 = vmatpush2.msra.mxu0 0.0
    %1487 = vmatprep.subr.mxu0 0.0
    %1488 = vmatpush2.msra.mxu0 0.0
    %1489 = vmatprep.subr.mxu0 0.0
    %1490 = vmatpush2.msra.mxu0 0.0
    %1491 = vmatprep.subr.mxu0 0.0
    %1492 = vmatpush2.msra.mxu0 0.0
    %1493 = vmatprep.subr.mxu0 0.0
    %1494 = vmatpush2.msra.mxu0 0.0
    %1495 = vmatprep.subr.mxu0 0.0
    %1496 = vmatpush2.msra.mxu0 0.0
    %1497 = vmatprep.subr.mxu0 0.0
    %1498 = vmatpush2.msra.mxu0 0.0
    %1499 = vmatprep.subr.mxu0 0.0
    %1500 = vmatpush2.msra.mxu0 0.0
    %1501 = vmatprep.subr.mxu0 0.0
    %1502 = vmatpush2.msra.mxu0 0.0
    %1503 = vmatprep.subr.mxu0 0.0
    %1504 = vmatpush2.msra.mxu0 0.0
    %1505 = vmatprep.subr.mxu0 0.0
    %1506 = vmatpush2.msra.mxu0 0.0
    %1507 = vmatprep.subr.mxu0 0.0
    %1508 = vmatpush2.msra.mxu0 0.0
    %1509 = vmatprep.mubr.f32.mxu0 0.0
    %v1510 = vand.u32 %v1093, 4294901760
    %1511 = vmatmul.mubr.f32.gmra.mxu0 %v1510
    %v1512 = vpop.f32.mrf.mxu0
    %v1513 = vadd.f32 %v1429, %v1512
    %v1514 = vpop.f32.mrf.mxu0
    %v1515 = vadd.f32 %v1431, %v1514
    %1516 = vdwg.mxu0
    %1517 = vmatprep.subr.mxu0 0.0
    %1518 = vmatpush1.msra.mxu0 0.0
    %1519 = vmatprep.subr.mxu0 0.0
    %1520 = vmatpush1.msra.mxu0 0.0
    %1521 = vmatprep.subr.mxu0 0.0
    %1522 = vmatpush1.msra.mxu0 0.0
    %1523 = vmatprep.subr.mxu0 0.0
    %1524 = vmatpush1.msra.mxu0 0.0
    %1525 = vmatprep.subr.mxu0 0.0
    %1526 = vmatpush1.msra.mxu0 0.0
    %1527 = vmatprep.subr.mxu0 0.0
    %1528 = vmatpush1.msra.mxu0 0.0
    %1529 = vmatprep.subr.mxu0 0.0
    %1530 = vmatpush1.msra.mxu0 0.0
    %1531 = vmatprep.subr.mxu0 0.0
    %1532 = vmatpush1.msra.mxu0 0.0
    %1533 = vmatprep.subr.mxu0 0.0
    %1534 = vmatpush1.msra.mxu0 0.0
    %1535 = vmatprep.subr.mxu0 0.0
    %1536 = vmatpush1.msra.mxu0 0.0
    %1537 = vmatprep.subr.mxu0 0.0
    %1538 = vmatpush1.msra.mxu0 0.0
    %1539 = vmatprep.subr.mxu0 0.0
    %1540 = vmatpush1.msra.mxu0 0.0
    %1541 = vmatprep.subr.mxu0 0.0
    %1542 = vmatpush1.msra.mxu0 0.0
    %1543 = vmatprep.subr.mxu0 0.0
    %1544 = vmatpush1.msra.mxu0 0.0
    %v1545 = vand.u32 %v1100, 4294901760
    %1546 = vmatprep.subr.mxu0 %v1545
    %v1547 = vand.u32 %v1097, 4294901760
    %1548 = vmatpush1.msra.mxu0 %v1547
    %v1549 = vand.u32 %v1081, 4294901760
    %1550 = vmatprep.subr.mxu0 %v1549
    %v1551 = vand.u32 %v1080, 4294901760
    %1552 = vmatpush1.msra.mxu0 %v1551
    %1553 = vmatprep.subr.mxu0 0.0
    %1554 = vmatpush2.msra.mxu0 0.0
    %1555 = vmatprep.subr.mxu0 0.0
    %1556 = vmatpush2.msra.mxu0 0.0
    %1557 = vmatprep.subr.mxu0 0.0
    %1558 = vmatpush2.msra.mxu0 0.0
    %1559 = vmatprep.subr.mxu0 0.0
    %1560 = vmatpush2.msra.mxu0 0.0
    %1561 = vmatprep.subr.mxu0 0.0
    %1562 = vmatpush2.msra.mxu0 0.0
    %1563 = vmatprep.subr.mxu0 0.0
    %1564 = vmatpush2.msra.mxu0 0.0
    %1565 = vmatprep.subr.mxu0 0.0
    %1566 = vmatpush2.msra.mxu0 0.0
    %1567 = vmatprep.subr.mxu0 0.0
    %1568 = vmatpush2.msra.mxu0 0.0
    %1569 = vmatprep.subr.mxu0 0.0
    %1570 = vmatpush2.msra.mxu0 0.0
    %1571 = vmatprep.subr.mxu0 0.0
    %1572 = vmatpush2.msra.mxu0 0.0
    %1573 = vmatprep.subr.mxu0 0.0
    %1574 = vmatpush2.msra.mxu0 0.0
    %1575 = vmatprep.subr.mxu0 0.0
    %1576 = vmatpush2.msra.mxu0 0.0
    %1577 = vmatprep.subr.mxu0 0.0
    %1578 = vmatpush2.msra.mxu0 0.0
    %1579 = vmatprep.subr.mxu0 0.0
    %1580 = vmatpush2.msra.mxu0 0.0
    %1581 = vmatprep.subr.mxu0 0.0
    %1582 = vmatpush2.msra.mxu0 0.0
    %1583 = vmatprep.subr.mxu0 0.0
    %1584 = vmatpush2.msra.mxu0 0.0
    %1585 = vmatprep.mubr.f32.mxu0 0.0
    %v1586 = vand.u32 %v1093, 4294901760
    %1587 = vmatmul.mubr.f32.gmra.mxu0 %v1586
    %v1588 = vpop.f32.mrf.mxu0
    %v1589 = vadd.f32 %v1513, %v1588
    %v1590 = vpop.f32.mrf.mxu0
    %v1591 = vadd.f32 %v1515, %v1590
    %1592 = vdwg.mxu0
    %v1593 = vmax.f32 %v1589, 0.0
    %v1594 = vmax.f32 %v1591, 0.0
    %v1595 = vld [vmem:[%s5] sm:$0x3]
    %v1596 = vld [vmem:[%s6] sm:$0x3]
    %1598 = vset.pattern.permute.xlu0 0
    %1599 = vperm.xlu0 %1598, %v1596
    %v1600 = vpop.permute.xlu0 %1599
    %vm1602 = vcmask 39936
    %v1604 = vsel %vm1602, %v1595, 0
    %vm1606 = vcmask 1044480
    %v1608 = vsel %vm1606, %v1593, 0
    %v1611 = vsel %vm1606, %v1594, 0
    %1613 = vmatprep.subr.mxu0 0.0
    %1614 = vmatpush1.msra.mxu0 0.0
    %1615 = vmatprep.subr.mxu0 0.0
    %1616 = vmatpush1.msra.mxu0 0.0
    %1617 = vmatprep.subr.mxu0 0.0
    %1618 = vmatpush1.msra.mxu0 0.0
    %1619 = vmatprep.subr.mxu0 0.0
    %1620 = vmatpush1.msra.mxu0 0.0
    %1621 = vmatprep.subr.mxu0 0.0
    %1622 = vmatpush1.msra.mxu0 0.0
    %1623 = vmatprep.subr.mxu0 0.0
    %1624 = vmatpush1.msra.mxu0 0.0
    %1625 = vmatprep.subr.mxu0 0.0
    %1626 = vmatpush1.msra.mxu0 0.0
    %1627 = vmatprep.subr.mxu0 0.0
    %1628 = vmatpush1.msra.mxu0 0.0
    %1629 = vmatprep.subr.mxu0 0.0
    %1630 = vmatpush1.msra.mxu0 0.0
    %1631 = vmatprep.subr.mxu0 0.0
    %1632 = vmatpush1.msra.mxu0 0.0
    %1633 = vmatprep.subr.mxu0 0.0
    %1634 = vmatpush1.msra.mxu0 0.0
    %1635 = vmatprep.subr.mxu0 0.0
    %1636 = vmatpush1.msra.mxu0 0.0
    %1637 = vmatprep.subr.mxu0 0.0
    %1638 = vmatpush1.msra.mxu0 0.0
    %1639 = vmatprep.subr.mxu0 0.0
    %1640 = vmatpush1.msra.mxu0 0.0
    %1641 = vmatprep.subr.mxu0 0.0
    %1642 = vmatpush1.msra.mxu0 0.0
    %v1643 = vand.u32 %v1611, 4294901760
    %1644 = vmatprep.subr.mxu0 %v1643
    %v1645 = vand.u32 %v1608, 4294901760
    %1646 = vmatpush1.msra.mxu0 %v1645
    %1647 = vmatprep.subr.mxu0 0.0
    %1648 = vmatpush2.msra.mxu0 0.0
    %1649 = vmatprep.subr.mxu0 0.0
    %1650 = vmatpush2.msra.mxu0 0.0
    %1651 = vmatprep.subr.mxu0 0.0
    %1652 = vmatpush2.msra.mxu0 0.0
    %1653 = vmatprep.subr.mxu0 0.0
    %1654 = vmatpush2.msra.mxu0 0.0
    %1655 = vmatprep.subr.mxu0 0.0
    %1656 = vmatpush2.msra.mxu0 0.0
    %1657 = vmatprep.subr.mxu0 0.0
    %1658 = vmatpush2.msra.mxu0 0.0
    %1659 = vmatprep.subr.mxu0 0.0
    %1660 = vmatpush2.msra.mxu0 0.0
    %1661 = vmatprep.subr.mxu0 0.0
    %1662 = vmatpush2.msra.mxu0 0.0
    %1663 = vmatprep.subr.mxu0 0.0
    %1664 = vmatpush2.msra.mxu0 0.0
    %1665 = vmatprep.subr.mxu0 0.0
    %1666 = vmatpush2.msra.mxu0 0.0
    %1667 = vmatprep.subr.mxu0 0.0
    %1668 = vmatpush2.msra.mxu0 0.0
    %1669 = vmatprep.subr.mxu0 0.0
    %1670 = vmatpush2.msra.mxu0 0.0
    %1671 = vmatprep.subr.mxu0 0.0
    %1672 = vmatpush2.msra.mxu0 0.0
    %1673 = vmatprep.subr.mxu0 0.0
    %1674 = vmatpush2.msra.mxu0 0.0
    %1675 = vmatprep.subr.mxu0 0.0
    %1676 = vmatpush2.msra.mxu0 0.0
    %1677 = vmatprep.subr.mxu0 0.0
    %1678 = vmatpush2.msra.mxu0 0.0
    %1679 = vmatprep.mubr.f32.mxu0 0.0
    %v1680 = vand.u32 %v1604, 4294901760
    %v1681 = vsub.f32 %v1604, %v1680
    %v1682 = vand.u32 %v1681, 4294901760
    %v1683 = vsub.f32 %v1681, %v1682
    %v1684 = vand.u32 %v1683, 4294901760
    %1685 = vmatmul.mubr.f32.gmra.mxu0 %v1684
    %v1686 = vpop.f32.mrf.mxu0
    %v1687 = vadd.f32 %v1600, %v1686
    %v1688 = vpop.f32.mrf.mxu0
    %v1689 = vadd.f32 %v1600, %v1688
    %1690 = vdwg.mxu0
    %1691 = vmatprep.subr.mxu0 0.0
    %1692 = vmatpush1.msra.mxu0 0.0
    %1693 = vmatprep.subr.mxu0 0.0
    %1694 = vmatpush1.msra.mxu0 0.0
    %1695 = vmatprep.subr.mxu0 0.0
    %1696 = vmatpush1.msra.mxu0 0.0
    %1697 = vmatprep.subr.mxu0 0.0
    %1698 = vmatpush1.msra.mxu0 0.0
    %1699 = vmatprep.subr.mxu0 0.0
    %1700 = vmatpush1.msra.mxu0 0.0
    %1701 = vmatprep.subr.mxu0 0.0
    %1702 = vmatpush1.msra.mxu0 0.0
    %1703 = vmatprep.subr.mxu0 0.0
    %1704 = vmatpush1.msra.mxu0 0.0
    %1705 = vmatprep.subr.mxu0 0.0
    %1706 = vmatpush1.msra.mxu0 0.0
    %1707 = vmatprep.subr.mxu0 0.0
    %1708 = vmatpush1.msra.mxu0 0.0
    %1709 = vmatprep.subr.mxu0 0.0
    %1710 = vmatpush1.msra.mxu0 0.0
    %1711 = vmatprep.subr.mxu0 0.0
    %1712 = vmatpush1.msra.mxu0 0.0
    %1713 = vmatprep.subr.mxu0 0.0
    %1714 = vmatpush1.msra.mxu0 0.0
    %1715 = vmatprep.subr.mxu0 0.0
    %1716 = vmatpush1.msra.mxu0 0.0
    %1717 = vmatprep.subr.mxu0 0.0
    %1718 = vmatpush1.msra.mxu0 0.0
    %1719 = vmatprep.subr.mxu0 0.0
    %1720 = vmatpush1.msra.mxu0 0.0
    %v1721 = vand.u32 %v1611, 4294901760
    %v1722 = vsub.f32 %v1611, %v1721
    %v1723 = vand.u32 %v1722, 4294901760
    %v1724 = vsub.f32 %v1722, %v1723
    %v1725 = vand.u32 %v1724, 4294901760
    %1726 = vmatprep.subr.mxu0 %v1725
    %v1727 = vand.u32 %v1608, 4294901760
    %v1728 = vsub.f32 %v1608, %v1727
    %v1729 = vand.u32 %v1728, 4294901760
    %v1730 = vsub.f32 %v1728, %v1729
    %v1731 = vand.u32 %v1730, 4294901760
    %1732 = vmatpush1.msra.mxu0 %v1731
    %1733 = vmatprep.subr.mxu0 0.0
    %1734 = vmatpush2.msra.mxu0 0.0
    %1735 = vmatprep.subr.mxu0 0.0
    %1736 = vmatpush2.msra.mxu0 0.0
    %1737 = vmatprep.subr.mxu0 0.0
    %1738 = vmatpush2.msra.mxu0 0.0
    %1739 = vmatprep.subr.mxu0 0.0
    %1740 = vmatpush2.msra.mxu0 0.0
    %1741 = vmatprep.subr.mxu0 0.0
    %1742 = vmatpush2.msra.mxu0 0.0
    %1743 = vmatprep.subr.mxu0 0.0
    %1744 = vmatpush2.msra.mxu0 0.0
    %1745 = vmatprep.subr.mxu0 0.0
    %1746 = vmatpush2.msra.mxu0 0.0
    %1747 = vmatprep.subr.mxu0 0.0
    %1748 = vmatpush2.msra.mxu0 0.0
    %1749 = vmatprep.subr.mxu0 0.0
    %1750 = vmatpush2.msra.mxu0 0.0
    %1751 = vmatprep.subr.mxu0 0.0
    %1752 = vmatpush2.msra.mxu0 0.0
    %1753 = vmatprep.subr.mxu0 0.0
    %1754 = vmatpush2.msra.mxu0 0.0
    %1755 = vmatprep.subr.mxu0 0.0
    %1756 = vmatpush2.msra.mxu0 0.0
    %1757 = vmatprep.subr.mxu0 0.0
    %1758 = vmatpush2.msra.mxu0 0.0
    %1759 = vmatprep.subr.mxu0 0.0
    %1760 = vmatpush2.msra.mxu0 0.0
    %1761 = vmatprep.subr.mxu0 0.0
    %1762 = vmatpush2.msra.mxu0 0.0
    %1763 = vmatprep.subr.mxu0 0.0
    %1764 = vmatpush2.msra.mxu0 0.0
    %1765 = vmatprep.mubr.f32.mxu0 0.0
    %v1766 = vand.u32 %v1604, 4294901760
    %1767 = vmatmul.mubr.f32.gmra.mxu0 %v1766
    %v1768 = vpop.f32.mrf.mxu0
    %v1769 = vadd.f32 %v1687, %v1768
    %v1770 = vpop.f32.mrf.mxu0
    %v1771 = vadd.f32 %v1689, %v1770
    %1772 = vdwg.mxu0
    %1773 = vmatprep.subr.mxu0 0.0
    %1774 = vmatpush1.msra.mxu0 0.0
    %1775 = vmatprep.subr.mxu0 0.0
    %1776 = vmatpush1.msra.mxu0 0.0
    %1777 = vmatprep.subr.mxu0 0.0
    %1778 = vmatpush1.msra.mxu0 0.0
    %1779 = vmatprep.subr.mxu0 0.0
    %1780 = vmatpush1.msra.mxu0 0.0
    %1781 = vmatprep.subr.mxu0 0.0
    %1782 = vmatpush1.msra.mxu0 0.0
    %1783 = vmatprep.subr.mxu0 0.0
    %1784 = vmatpush1.msra.mxu0 0.0
    %1785 = vmatprep.subr.mxu0 0.0
    %1786 = vmatpush1.msra.mxu0 0.0
    %1787 = vmatprep.subr.mxu0 0.0
    %1788 = vmatpush1.msra.mxu0 0.0
    %1789 = vmatprep.subr.mxu0 0.0
    %1790 = vmatpush1.msra.mxu0 0.0
    %1791 = vmatprep.subr.mxu0 0.0
    %1792 = vmatpush1.msra.mxu0 0.0
    %1793 = vmatprep.subr.mxu0 0.0
    %1794 = vmatpush1.msra.mxu0 0.0
    %1795 = vmatprep.subr.mxu0 0.0
    %1796 = vmatpush1.msra.mxu0 0.0
    %1797 = vmatprep.subr.mxu0 0.0
    %1798 = vmatpush1.msra.mxu0 0.0
    %1799 = vmatprep.subr.mxu0 0.0
    %1800 = vmatpush1.msra.mxu0 0.0
    %1801 = vmatprep.subr.mxu0 0.0
    %1802 = vmatpush1.msra.mxu0 0.0
    %v1803 = vand.u32 %v1611, 4294901760
    %v1804 = vsub.f32 %v1611, %v1803
    %1805 = vmatprep.subr.mxu0 %v1804
    %v1806 = vand.u32 %v1608, 4294901760
    %v1807 = vsub.f32 %v1608, %v1806
    %1808 = vmatpush1.msra.mxu0 %v1807
    %1809 = vmatprep.subr.mxu0 0.0
    %1810 = vmatpush2.msra.mxu0 0.0
    %1811 = vmatprep.subr.mxu0 0.0
    %1812 = vmatpush2.msra.mxu0 0.0
    %1813 = vmatprep.subr.mxu0 0.0
    %1814 = vmatpush2.msra.mxu0 0.0
    %1815 = vmatprep.subr.mxu0 0.0
    %1816 = vmatpush2.msra.mxu0 0.0
    %1817 = vmatprep.subr.mxu0 0.0
    %1818 = vmatpush2.msra.mxu0 0.0
    %1819 = vmatprep.subr.mxu0 0.0
    %1820 = vmatpush2.msra.mxu0 0.0
    %1821 = vmatprep.subr.mxu0 0.0
    %1822 = vmatpush2.msra.mxu0 0.0
    %1823 = vmatprep.subr.mxu0 0.0
    %1824 = vmatpush2.msra.mxu0 0.0
    %1825 = vmatprep.subr.mxu0 0.0
    %1826 = vmatpush2.msra.mxu0 0.0
    %1827 = vmatprep.subr.mxu0 0.0
    %1828 = vmatpush2.msra.mxu0 0.0
    %1829 = vmatprep.subr.mxu0 0.0
    %1830 = vmatpush2.msra.mxu0 0.0
    %1831 = vmatprep.subr.mxu0 0.0
    %1832 = vmatpush2.msra.mxu0 0.0
    %1833 = vmatprep.subr.mxu0 0.0
    %1834 = vmatpush2.msra.mxu0 0.0
    %1835 = vmatprep.subr.mxu0 0.0
    %1836 = vmatpush2.msra.mxu0 0.0
    %1837 = vmatprep.subr.mxu0 0.0
    %1838 = vmatpush2.msra.mxu0 0.0
    %1839 = vmatprep.subr.mxu0 0.0
    %1840 = vmatpush2.msra.mxu0 0.0
    %1841 = vmatprep.mubr.f32.mxu0 0.0
    %v1842 = vand.u32 %v1604, 4294901760
    %v1843 = vsub.f32 %v1604, %v1842
    %1844 = vmatmul.mubr.f32.gmra.mxu0 %v1843
    %v1845 = vpop.f32.mrf.mxu0
    %v1846 = vadd.f32 %v1769, %v1845
    %v1847 = vpop.f32.mrf.mxu0
    %v1848 = vadd.f32 %v1771, %v1847
    %1849 = vdwg.mxu0
    %1850 = vmatprep.subr.mxu0 0.0
    %1851 = vmatpush1.msra.mxu0 0.0
    %1852 = vmatprep.subr.mxu0 0.0
    %1853 = vmatpush1.msra.mxu0 0.0
    %1854 = vmatprep.subr.mxu0 0.0
    %1855 = vmatpush1.msra.mxu0 0.0
    %1856 = vmatprep.subr.mxu0 0.0
    %1857 = vmatpush1.msra.mxu0 0.0
    %1858 = vmatprep.subr.mxu0 0.0
    %1859 = vmatpush1.msra.mxu0 0.0
    %1860 = vmatprep.subr.mxu0 0.0
    %1861 = vmatpush1.msra.mxu0 0.0
    %1862 = vmatprep.subr.mxu0 0.0
    %1863 = vmatpush1.msra.mxu0 0.0
    %1864 = vmatprep.subr.mxu0 0.0
    %1865 = vmatpush1.msra.mxu0 0.0
    %1866 = vmatprep.subr.mxu0 0.0
    %1867 = vmatpush1.msra.mxu0 0.0
    %1868 = vmatprep.subr.mxu0 0.0
    %1869 = vmatpush1.msra.mxu0 0.0
    %1870 = vmatprep.subr.mxu0 0.0
    %1871 = vmatpush1.msra.mxu0 0.0
    %1872 = vmatprep.subr.mxu0 0.0
    %1873 = vmatpush1.msra.mxu0 0.0
    %1874 = vmatprep.subr.mxu0 0.0
    %1875 = vmatpush1.msra.mxu0 0.0
    %1876 = vmatprep.subr.mxu0 0.0
    %1877 = vmatpush1.msra.mxu0 0.0
    %1878 = vmatprep.subr.mxu0 0.0
    %1879 = vmatpush1.msra.mxu0 0.0
    %v1880 = vand.u32 %v1611, 4294901760
    %1881 = vmatprep.subr.mxu0 %v1880
    %v1882 = vand.u32 %v1608, 4294901760
    %1883 = vmatpush1.msra.mxu0 %v1882
    %1884 = vmatprep.subr.mxu0 0.0
    %1885 = vmatpush2.msra.mxu0 0.0
    %1886 = vmatprep.subr.mxu0 0.0
    %1887 = vmatpush2.msra.mxu0 0.0
    %1888 = vmatprep.subr.mxu0 0.0
    %1889 = vmatpush2.msra.mxu0 0.0
    %1890 = vmatprep.subr.mxu0 0.0
    %1891 = vmatpush2.msra.mxu0 0.0
    %1892 = vmatprep.subr.mxu0 0.0
    %1893 = vmatpush2.msra.mxu0 0.0
    %1894 = vmatprep.subr.mxu0 0.0
    %1895 = vmatpush2.msra.mxu0 0.0
    %1896 = vmatprep.subr.mxu0 0.0
    %1897 = vmatpush2.msra.mxu0 0.0
    %1898 = vmatprep.subr.mxu0 0.0
    %1899 = vmatpush2.msra.mxu0 0.0
    %1900 = vmatprep.subr.mxu0 0.0
    %1901 = vmatpush2.msra.mxu0 0.0
    %1902 = vmatprep.subr.mxu0 0.0
    %1903 = vmatpush2.msra.mxu0 0.0
    %1904 = vmatprep.subr.mxu0 0.0
    %1905 = vmatpush2.msra.mxu0 0.0
    %1906 = vmatprep.subr.mxu0 0.0
    %1907 = vmatpush2.msra.mxu0 0.0
    %1908 = vmatprep.subr.mxu0 0.0
    %1909 = vmatpush2.msra.mxu0 0.0
    %1910 = vmatprep.subr.mxu0 0.0
    %1911 = vmatpush2.msra.mxu0 0.0
    %1912 = vmatprep.subr.mxu0 0.0
    %1913 = vmatpush2.msra.mxu0 0.0
    %1914 = vmatprep.subr.mxu0 0.0
    %1915 = vmatpush2.msra.mxu0 0.0
    %1916 = vmatprep.mubr.f32.mxu0 0.0
    %v1917 = vand.u32 %v1604, 4294901760
    %v1918 = vsub.f32 %v1604, %v1917
    %v1919 = vand.u32 %v1918, 4294901760
    %1920 = vmatmul.mubr.f32.gmra.mxu0 %v1919
    %v1921 = vpop.f32.mrf.mxu0
    %v1922 = vadd.f32 %v1846, %v1921
    %v1923 = vpop.f32.mrf.mxu0
    %v1924 = vadd.f32 %v1848, %v1923
    %1925 = vdwg.mxu0
    %1926 = vmatprep.subr.mxu0 0.0
    %1927 = vmatpush1.msra.mxu0 0.0
    %1928 = vmatprep.subr.mxu0 0.0
    %1929 = vmatpush1.msra.mxu0 0.0
    %1930 = vmatprep.subr.mxu0 0.0
    %1931 = vmatpush1.msra.mxu0 0.0
    %1932 = vmatprep.subr.mxu0 0.0
    %1933 = vmatpush1.msra.mxu0 0.0
    %1934 = vmatprep.subr.mxu0 0.0
    %1935 = vmatpush1.msra.mxu0 0.0
    %1936 = vmatprep.subr.mxu0 0.0
    %1937 = vmatpush1.msra.mxu0 0.0
    %1938 = vmatprep.subr.mxu0 0.0
    %1939 = vmatpush1.msra.mxu0 0.0
    %1940 = vmatprep.subr.mxu0 0.0
    %1941 = vmatpush1.msra.mxu0 0.0
    %1942 = vmatprep.subr.mxu0 0.0
    %1943 = vmatpush1.msra.mxu0 0.0
    %1944 = vmatprep.subr.mxu0 0.0
    %1945 = vmatpush1.msra.mxu0 0.0
    %1946 = vmatprep.subr.mxu0 0.0
    %1947 = vmatpush1.msra.mxu0 0.0
    %1948 = vmatprep.subr.mxu0 0.0
    %1949 = vmatpush1.msra.mxu0 0.0
    %1950 = vmatprep.subr.mxu0 0.0
    %1951 = vmatpush1.msra.mxu0 0.0
    %1952 = vmatprep.subr.mxu0 0.0
    %1953 = vmatpush1.msra.mxu0 0.0
    %1954 = vmatprep.subr.mxu0 0.0
    %1955 = vmatpush1.msra.mxu0 0.0
    %v1956 = vand.u32 %v1611, 4294901760
    %v1957 = vsub.f32 %v1611, %v1956
    %v1958 = vand.u32 %v1957, 4294901760
    %1959 = vmatprep.subr.mxu0 %v1958
    %v1960 = vand.u32 %v1608, 4294901760
    %v1961 = vsub.f32 %v1608, %v1960
    %v1962 = vand.u32 %v1961, 4294901760
    %1963 = vmatpush1.msra.mxu0 %v1962
    %1964 = vmatprep.subr.mxu0 0.0
    %1965 = vmatpush2.msra.mxu0 0.0
    %1966 = vmatprep.subr.mxu0 0.0
    %1967 = vmatpush2.msra.mxu0 0.0
    %1968 = vmatprep.subr.mxu0 0.0
    %1969 = vmatpush2.msra.mxu0 0.0
    %1970 = vmatprep.subr.mxu0 0.0
    %1971 = vmatpush2.msra.mxu0 0.0
    %1972 = vmatprep.subr.mxu0 0.0
    %1973 = vmatpush2.msra.mxu0 0.0
    %1974 = vmatprep.subr.mxu0 0.0
    %1975 = vmatpush2.msra.mxu0 0.0
    %1976 = vmatprep.subr.mxu0 0.0
    %1977 = vmatpush2.msra.mxu0 0.0
    %1978 = vmatprep.subr.mxu0 0.0
    %1979 = vmatpush2.msra.mxu0 0.0
    %1980 = vmatprep.subr.mxu0 0.0
    %1981 = vmatpush2.msra.mxu0 0.0
    %1982 = vmatprep.subr.mxu0 0.0
    %1983 = vmatpush2.msra.mxu0 0.0
    %1984 = vmatprep.subr.mxu0 0.0
    %1985 = vmatpush2.msra.mxu0 0.0
    %1986 = vmatprep.subr.mxu0 0.0
    %1987 = vmatpush2.msra.mxu0 0.0
    %1988 = vmatprep.subr.mxu0 0.0
    %1989 = vmatpush2.msra.mxu0 0.0
    %1990 = vmatprep.subr.mxu0 0.0
    %1991 = vmatpush2.msra.mxu0 0.0
    %1992 = vmatprep.subr.mxu0 0.0
    %1993 = vmatpush2.msra.mxu0 0.0
    %1994 = vmatprep.subr.mxu0 0.0
    %1995 = vmatpush2.msra.mxu0 0.0
    %1996 = vmatprep.mubr.f32.mxu0 0.0
    %v1997 = vand.u32 %v1604, 4294901760
    %1998 = vmatmul.mubr.f32.gmra.mxu0 %v1997
    %v1999 = vpop.f32.mrf.mxu0
    %v2000 = vadd.f32 %v1922, %v1999
    %v2001 = vpop.f32.mrf.mxu0
    %v2002 = vadd.f32 %v1924, %v2001
    %2003 = vdwg.mxu0
    %2004 = vmatprep.subr.mxu0 0.0
    %2005 = vmatpush1.msra.mxu0 0.0
    %2006 = vmatprep.subr.mxu0 0.0
    %2007 = vmatpush1.msra.mxu0 0.0
    %2008 = vmatprep.subr.mxu0 0.0
    %2009 = vmatpush1.msra.mxu0 0.0
    %2010 = vmatprep.subr.mxu0 0.0
    %2011 = vmatpush1.msra.mxu0 0.0
    %2012 = vmatprep.subr.mxu0 0.0
    %2013 = vmatpush1.msra.mxu0 0.0
    %2014 = vmatprep.subr.mxu0 0.0
    %2015 = vmatpush1.msra.mxu0 0.0
    %2016 = vmatprep.subr.mxu0 0.0
    %2017 = vmatpush1.msra.mxu0 0.0
    %2018 = vmatprep.subr.mxu0 0.0
    %2019 = vmatpush1.msra.mxu0 0.0
    %2020 = vmatprep.subr.mxu0 0.0
    %2021 = vmatpush1.msra.mxu0 0.0
    %2022 = vmatprep.subr.mxu0 0.0
    %2023 = vmatpush1.msra.mxu0 0.0
    %2024 = vmatprep.subr.mxu0 0.0
    %2025 = vmatpush1.msra.mxu0 0.0
    %2026 = vmatprep.subr.mxu0 0.0
    %2027 = vmatpush1.msra.mxu0 0.0
    %2028 = vmatprep.subr.mxu0 0.0
    %2029 = vmatpush1.msra.mxu0 0.0
    %2030 = vmatprep.subr.mxu0 0.0
    %2031 = vmatpush1.msra.mxu0 0.0
    %2032 = vmatprep.subr.mxu0 0.0
    %2033 = vmatpush1.msra.mxu0 0.0
    %v2034 = vand.u32 %v1611, 4294901760
    %2035 = vmatprep.subr.mxu0 %v2034
    %v2036 = vand.u32 %v1608, 4294901760
    %2037 = vmatpush1.msra.mxu0 %v2036
    %2038 = vmatprep.subr.mxu0 0.0
    %2039 = vmatpush2.msra.mxu0 0.0
    %2040 = vmatprep.subr.mxu0 0.0
    %2041 = vmatpush2.msra.mxu0 0.0
    %2042 = vmatprep.subr.mxu0 0.0
    %2043 = vmatpush2.msra.mxu0 0.0
    %2044 = vmatprep.subr.mxu0 0.0
    %2045 = vmatpush2.msra.mxu0 0.0
    %2046 = vmatprep.subr.mxu0 0.0
    %2047 = vmatpush2.msra.mxu0 0.0
    %2048 = vmatprep.subr.mxu0 0.0
    %2049 = vmatpush2.msra.mxu0 0.0
    %2050 = vmatprep.subr.mxu0 0.0
    %2051 = vmatpush2.msra.mxu0 0.0
    %2052 = vmatprep.subr.mxu0 0.0
    %2053 = vmatpush2.msra.mxu0 0.0
    %2054 = vmatprep.subr.mxu0 0.0
    %2055 = vmatpush2.msra.mxu0 0.0
    %2056 = vmatprep.subr.mxu0 0.0
    %2057 = vmatpush2.msra.mxu0 0.0
    %2058 = vmatprep.subr.mxu0 0.0
    %2059 = vmatpush2.msra.mxu0 0.0
    %2060 = vmatprep.subr.mxu0 0.0
    %2061 = vmatpush2.msra.mxu0 0.0
    %2062 = vmatprep.subr.mxu0 0.0
    %2063 = vmatpush2.msra.mxu0 0.0
    %2064 = vmatprep.subr.mxu0 0.0
    %2065 = vmatpush2.msra.mxu0 0.0
    %2066 = vmatprep.subr.mxu0 0.0
    %2067 = vmatpush2.msra.mxu0 0.0
    %2068 = vmatprep.subr.mxu0 0.0
    %2069 = vmatpush2.msra.mxu0 0.0
    %2070 = vmatprep.mubr.f32.mxu0 0.0
    %v2071 = vand.u32 %v1604, 4294901760
    %2072 = vmatmul.mubr.f32.gmra.mxu0 %v2071
    %v2073 = vpop.f32.mrf.mxu0
    %v2074 = vadd.f32 %v2000, %v2073
    %v2075 = vpop.f32.mrf.mxu0
    %v2076 = vadd.f32 %v2002, %v2075
    %2077 = vdwg.mxu0
    %v2080 = vcombine.low %v2074, %v2076
    %v2082 = vunpack.c.l.s4 1983009808
    %v2083 = vunpack.c.0.s8 %v2082
    %v2084 = vlaneseq
    %v2085 = vshrl.u32 %v2084, 7
    %v2086 = vsub.s32 %v2083, %v2085
    %v2087 = vrot.slane %v2080, %v2086
    %2089 = vst [vmem:[#allocation2] sm:$0xf] %v2087
    // Predicated region
    $region30: #{tpu_custom_call.1} parent=1 // pred_check
      _
    $region31: #{tpu_custom_call.1} parent=1 // pred_check_branch
      %2091 = sbr.rel (0) target = $region33
    $region32: #{tpu_custom_call.1} parent=1 // pred_region
      %s2093 = ssub.s32 64, 64
      %2094 = vsyncadd [#allocation3], %s2093
      %s2096 = sshll.u32 [#allocation2], 4
      %s2097 = int_to_ptr.vmem [resolvable:$true] %s2096
      %2099 = dma.vmem_to_hbm [thread:$0]  %s2097, 64, %s7, [#allocation3]
    $region33: #{tpu_custom_call.1} parent=1 // pred_fallthru
      _
    // Predicated region
    $region34: #{tpu_custom_call.1} parent=1 // pred_check
      _
    $region35: #{tpu_custom_call.1} parent=1 // pred_check_branch
      %2101 = sbr.rel (0) target = $region37
    $region36: #{tpu_custom_call.1} parent=1 // pred_region
      %2102 = dma.done [#allocation3], 64
    $region37: #{tpu_custom_call.1} parent=1 // pred_fallthru
      _
    %2103 = vsyncpa [#allocation3], 1

</llo_original>
